<compile_context>
chip_gen: v5e
topology: v5e:2x2
jax: 0.10.0
libtpu: 0.0.40
codegen_flags: <defaults>
</compile_context>

<pallas_src>
import functools

import jax
import jax.numpy as jnp
from jax.experimental import pallas as pl
from jax.experimental.pallas import tpu as pltpu


# ----------------------------------------------------------------------------- helpers
def _round_up(x, q):
    return ((x + q - 1) // q) * q


def _pick_tile(n, target, quantum):
    """Largest divisor of n that is <= target and a multiple of quantum, else n."""
    t = min(target, n)
    t -= t % quantum
    while t >= quantum:
        if n % t == 0:
            return t
        t -= quantum
    return n


def _pad_rows(a, n_pad):
    """Edge-pad rows so padded rows exactly duplicate a valid row (max(d2) unchanged)."""
    n = a.shape[0]
    if n_pad == n:
        return a
    return jnp.pad(a, ((0, n_pad - n), (0, 0)), mode="edge")


def _prep_icnn_params(params):
    """Pre-transpose torch-style [out, in] weights and precompute softplus(W0)."""
    a0w, a0b, w0, a1w, a1b = params
    return (jnp.asarray(a0w, jnp.float32).T,                       # [K, H]
            jnp.asarray(a0b, jnp.float32).reshape(1, -1),          # [1, H]
            jnp.logaddexp(jnp.asarray(w0, jnp.float32), 0.0
                          ).reshape(1, -1),                        # softplus(W0), [1, H]
            jnp.asarray(a1w, jnp.float32).reshape(1, -1),          # [1, K]
            jnp.asarray(a1b, jnp.float32).reshape(1, 1))           # [1, 1]


# ----------------------------------------------------------------------------- stage 1
def _embed_kernel(has_noise, *refs):
    if has_noise:
        (x_ref, m_ref, delta_ref, a0w_ref, a0b_ref, w0sp_ref,
         a1w_ref, a1b_ref, emb_ref, pot_ref, sq_ref) = refs
    else:
        (x_ref, m_ref, a0w_ref, a0b_ref, w0sp_ref,
         a1w_ref, a1b_ref, emb_ref, pot_ref, sq_ref) = refs
        delta_ref = None

    proj = jnp.dot(x_ref[...], m_ref[...], preferred_element_type=jnp.float32)  # [tm, K]
    inv = 1.0 / (jnp.sqrt(jnp.sum(proj * proj, axis=1, keepdims=True)) + 1e-8)
    emb = proj * inv                                                             # row-normalized
    if has_noise:
        emb = emb + delta_ref[...]            # Delta pre-scaled by sigma in the wrapper
    emb_ref[...] = emb
    sq_ref[...] = jnp.sum(emb * emb, axis=1, keepdims=True)

    # ICNN: z = LeakyReLU(0.2)(A0 x); z = z^2; y = z @ softplus(W0)^T + A1 x + b1
    z = jnp.dot(emb, a0w_ref[...], preferred_element_type=jnp.float32) + a0b_ref[...]
    z = jnp.where(z > 0, z, 0.2 * z)
    z = z * z
    y = (jnp.sum(z * w0sp_ref[...], axis=1, keepdims=True)
         + jnp.sum(emb * a1w_ref[...], axis=1, keepdims=True)
         + a1b_ref[...])
    pot_ref[...] = y * 1e-4


def _embed(x, m, icnn_p, row_tile, delta_sigma=None):
    n, d = x.shape
    k = m.shape[1]
    a0w_t, a0b, w0sp, a1w, a1b = icnn_p
    h = a0w_t.shape[1]
    tm = _pick_tile(n, row_tile, 8)
    has_noise = delta_sigma is not None

    in_specs = [pl.BlockSpec((tm, d), lambda i: (i, 0)),
                pl.BlockSpec((d, k), lambda i: (0, 0))]
    args = [x, m]
    if has_noise:
        in_specs.append(pl.BlockSpec((tm, k), lambda i: (i, 0)))
        args.append(delta_sigma)
    in_specs += [pl.BlockSpec((k, h), lambda i: (0, 0)),
                 pl.BlockSpec((1, h), lambda i: (0, 0)),
                 pl.BlockSpec((1, h), lambda i: (0, 0)),
                 pl.BlockSpec((1, k), lambda i: (0, 0)),
                 pl.BlockSpec((1, 1), lambda i: (0, 0))]
    args += [a0w_t, a0b, w0sp, a1w, a1b]

    return pl.pallas_call(
        functools.partial(_embed_kernel, has_noise),
        grid=(n // tm,),
        in_specs=in_specs,
        out_specs=[pl.BlockSpec((tm, k), lambda i: (i, 0)),
                   pl.BlockSpec((tm, 1), lambda i: (i, 0)),
                   pl.BlockSpec((tm, 1), lambda i: (i, 0))],
        out_shape=(jax.ShapeDtypeStruct((n, k), jnp.float32),
                   jax.ShapeDtypeStruct((n, 1), jnp.float32),
                   jax.ShapeDtypeStruct((n, 1), jnp.float32)),
        compiler_params=pltpu.CompilerParams(dimension_semantics=("parallel",)),
    )(*args)


# ----------------------------------------------------------------------------- stage 2
def _max_kernel(xs_g_ref, xt_ref, xs_sq_ref, xt_sq_ref, out_ref):
    # Per-i-tile running max over the j (target tile) axis; output block is
    # resident across j (same block index), distinct per i -> i can be parallel.
    @pl.when(pl.program_id(1) == 0)
    def _init():
        out_ref[...] = jnp.zeros_like(out_ref)        # d2 max is clamped at 0 anyway

    gram = jax.lax.dot_general(xs_g_ref[...], xt_ref[...],
                               dimension_numbers=(((1,), (1,)), ((), ())),
                               preferred_element_type=jnp.float32)   # = -2 * <xs, xt>
    d2 = xs_sq_ref[...] + xt_sq_ref[...] + gram
    tile_max = jnp.max(jnp.max(d2, axis=1, keepdims=True), axis=0, keepdims=True)
    out_ref[...] = jnp.maximum(out_ref[...], tile_max.reshape(1, 1, 1))


def _penalty_kernel(xs_g_ref, xt_ref, xs_sq_ref, xt_sq_ref, phi_ref, psi_ref, out_ref):
    @pl.when(pl.program_id(1) == 0)
    def _init():
        out_ref[...] = jnp.zeros_like(out_ref)

    # Inputs carry the (1e-4 / (max(C)+1e-8))^2 scale and the -2 Gram factor,
    # so d2 here is already scale^2 * ||xs - xt||^2 and c = sqrt(d2) directly.
    gram = jax.lax.dot_general(xs_g_ref[...], xt_ref[...],
                               dimension_numbers=(((1,), (1,)), ((), ())),
                               preferred_element_type=jnp.float32)
    d2 = jnp.maximum(xs_sq_ref[...] + xt_sq_ref[...] + gram, 0.0)
    c = jnp.sqrt(d2)
    viol = (phi_ref[...] + psi_ref[...]) - c      # phi carries +ell*sigma^2; pads are -1e9
    pen = jnp.maximum(viol, 0.0)
    tile_sum = jnp.sum(jnp.sum(pen * pen, axis=1, keepdims=True), axis=0, keepdims=True)
    out_ref[...] += tile_sum.reshape(1, 1, 1)


def _stage2_call(kernel, tm, tn, k, ns_pad, nt_pad, with_potentials, vmem_limit_bytes):
    gi, gj = ns_pad // tm, nt_pad // tn
    in_specs = [pl.BlockSpec((tm, k), lambda i, j: (i, 0)),     # source Gram operand
                pl.BlockSpec((tn, k), lambda i, j: (j, 0)),     # target embeddings
                pl.BlockSpec((tm, 1), lambda i, j: (i, 0)),     # source squared norms
                pl.BlockSpec((1, tn), lambda i, j: (0, j))]     # target squared norms (row)
    if with_potentials:
        in_specs += [pl.BlockSpec((tm, 1), lambda i, j: (i, 0)),   # phi (+ell*sigma^2, masked)
                     pl.BlockSpec((1, tn), lambda i, j: (0, j))]   # psi (masked)
    return pl.pallas_call(
        kernel,
        grid=(gi, gj),
        in_specs=in_specs,
        # Per-i-tile partial result as a lane-dense (8,128) block; the whole block
        # carries the same value, the wrapper reads [:, 0, 0] / takes the max.
        out_specs=pl.BlockSpec((1, 8, 128), lambda i, j: (i, 0, 0)),
        out_shape=jax.ShapeDtypeStruct((gi, 8, 128), jnp.float32),
        compiler_params=pltpu.CompilerParams(
            dimension_semantics=("parallel", "arbitrary"),
            vmem_limit_bytes=vmem_limit_bytes),
    )


# ----------------------------------------------------------------------------- wrapper
def neural_ot_loss(xs, xt, m, delta, phi_params, psi_params, sigma, ell=0.1,
                   row_tile=1024, cost_tile_s=512, cost_tile_t=2048,
                   vmem_limit_bytes=48 * 1024 * 1024):
    """Pallas-fused NeuralOT.forward; returns the scalar loss."""
    xs = jnp.asarray(xs, jnp.float32)
    xt = jnp.asarray(xt, jnp.float32)
    m = jnp.asarray(m, jnp.float32)
    delta = jnp.asarray(delta, jnp.float32)
    ns = xs.shape[0]
    nt = xt.shape[0]
    k = m.shape[1]

    sigma_f = jnp.asarray(sigma, jnp.float32)
    ell_f = jnp.asarray(ell, jnp.float32)

    # Tile / padding geometry: pad Ns/Nt up to the tile quantum so tiles always
    # stay at the tuned size (no silent full-extent fallback).
    tm = min(_round_up(cost_tile_s, 8), _round_up(ns, 8))
    tn = min(_round_up(cost_tile_t, 128), _round_up(nt, 128))
    ns_pad = _round_up(ns, tm)
    nt_pad = _round_up(nt, tn)

    xs_p = _pad_rows(xs, ns_pad)
    xt_p = _pad_rows(xt, nt_pad)
    # TODO(synk): noise is drawn host-side with jax.random (torch.randn_like
    # equivalent) and passed in; could move in-kernel with pltpu.prng_*.
    delta_sig = _pad_rows(delta, ns_pad) * sigma_f   # fold sigma here (no SMEM scalar)

    phi_p = _prep_icnn_params(phi_params)
    psi_p = _prep_icnn_params(psi_params)

    # Stage 1: embeddings + potentials + row squared norms for source and target.
    xs_emb, phi_out, xs_sq = _embed(xs_p, m, phi_p, row_tile, delta_sigma=delta_sig)
    xt_emb, psi_out, xt_sq = _embed(xt_p, m, psi_p, row_tile)

    # Potential term over the valid (unpadded) rows only — tiny jnp reductions.
    potential = jnp.mean(phi_out[:ns]) + jnp.mean(psi_out[:nt])

    # Fold ell*sigma^2 into phi; mask padded rows/cols with -1e9 so padded pairs
    # never produce a positive violation (relu -> 0, dropping out of the sum).
    row_valid = (jnp.arange(ns_pad) < ns)[:, None]
    col_valid = (jnp.arange(nt_pad) < nt)[None, :]
    phi_eff = jnp.where(row_valid, phi_out + ell_f * sigma_f * sigma_f, -1e9)
    psi_eff = jnp.where(col_valid, psi_out.reshape(1, nt_pad), -1e9)

    xt_sq_row = xt_sq.reshape(1, nt_pad)
    xs_gram = xs_emb * (-2.0)   # fold the Gram-identity (-2) out of the O(Ns*Nt) loop

    # Stage 2a: global max of squared distances (per-i-tile partial maxima).
    max_part = _stage2_call(_max_kernel, tm, tn, k, ns_pad, nt_pad, False,
                            vmem_limit_bytes)(xs_gram, xt_emb, xs_sq, xt_sq_row)
    maxd2 = jnp.max(max_part)                         # >= 0 (accumulator init is 0)
    scale = 1e-4 / (jnp.sqrt(maxd2) + 1e-8)           # 1e-4 / (max(C) + 1e-8)
    s2 = scale * scale                                # sqrt(s2*d2) == scale*sqrt(d2)

    # Stage 2b: penalty partial sums with all scales pre-folded into the operands.
    pen_part = _stage2_call(_penalty_kernel, tm, tn, k, ns_pad, nt_pad, True,
                            vmem_limit_bytes)(xs_gram * s2, xt_emb, xs_sq * s2,
                                              xt_sq_row * s2, phi_eff, psi_eff)
    pen_total = jnp.sum(pen_part[:, 0, 0])
    penalty = 0.1 * pen_total / (ns * nt)

    return -potential + penalty


# ----------------------------------------------------------------------------- reference
def _reference_loss(xs, xt, m, delta, phi_params, psi_params, sigma, ell):
    hp = jax.lax.Precision.HIGHEST
    xs_t = jnp.dot(xs, m, precision=hp)
    xt_t = jnp.dot(xt, m, precision=hp)
    xs_t = xs_t / (jnp.sqrt(jnp.sum(xs_t * xs_t, axis=1, keepdims=True)) + 1e-8)
    xt_t = xt_t / (jnp.sqrt(jnp.sum(xt_t * xt_t, axis=1, keepdims=True)) + 1e-8)
    xs_n = xs_t + delta * sigma

    def icnn(x, p):
        a0w, a0b, w0, a1w, a1b = p
        z = jnp.dot(x, a0w.T, precision=hp) + a0b
        z = jnp.where(z > 0, z, 0.2 * z)
        z = z * z
        return (jnp.dot(z, jnp.logaddexp(w0, 0.0).T, precision=hp)
                + jnp.dot(x, a1w.T, precision=hp) + a1b)

    phi = icnn(xs_n, phi_params) * 1e-4
    psi = icnn(xt_t, psi_params) * 1e-4
    xs_sq = jnp.sum(xs_n * xs_n, axis=1, keepdims=True)
    xt_sq = jnp.sum(xt_t * xt_t, axis=1, keepdims=True)
    d2 = jnp.maximum(xs_sq + xt_sq.T - 2.0 * jnp.dot(xs_n, xt_t.T, precision=hp), 0.0)
    c = jnp.sqrt(d2)
    c = c / (jnp.max(c) + 1e-8) * 1e-4
    c_tilde = c - ell * sigma ** 2
    viol = phi + psi.T - c_tilde
    potential = jnp.mean(phi) + jnp.mean(psi)
    penalty = 0.1 * jnp.mean(jnp.maximum(viol, 0.0) ** 2)
    return -potential + penalty


def _init_icnn_params(keys, input_dim, hidden):
    """ICNN(input_dim=k, hidden_units=[32]) parameter shapes (PyTorch [out, in])."""
    a0w = jax.random.normal(keys[0], (hidden, input_dim), jnp.float32) * 0.1  # A[0].weight
    a0b = jnp.zeros((1, hidden), jnp.float32)                                 # A[0].bias
    w0 = jax.random.normal(keys[1], (1, hidden), jnp.float32) * 0.1           # W[0].weight
    a1w = jax.random.normal(keys[2], (1, input_dim), jnp.float32) * 0.1       # A[1].weight
    a1b = jnp.zeros((1, 1), jnp.float32)                                      # A[1].bias
    return [a0w, a0b, w0, a1w, a1b]


if __name__ == "__main__":
    # Small deterministic example: d=16, projection k=8, hidden=32.  Non-square,
    # non-tile-aligned sample counts so the padding/masking path, the multi-tile
    # grids and the per-i-tile partial accumulators are all exercised.
    n_s, n_t, d, k, hidden = 320, 272, 16, 8, 32
    sigma = 0.05

    key = jax.random.PRNGKey(0)
    keys = jax.random.split(key, 10)

    X_s = jax.random.normal(keys[0], (n_s, d), jnp.float32)
    X_t = jax.random.normal(keys[1], (n_t, d), jnp.float32)
    M = jax.random.normal(keys[2], (d, k), jnp.float32) / jnp.sqrt(2.0)
    Delta = jax.random.normal(keys[3], (n_s, k), jnp.float32)

    phi_params = _init_icnn_params(keys[4:7], k, hidden)
    psi_params = _init_icnn_params(keys[7:10], k, hidden)

    loss = neural_ot_loss(X_s, X_t, M, Delta, phi_params, psi_params, sigma,
                          row_tile=128, cost_tile_s=128, cost_tile_t=128)
    loss = jax.block_until_ready(loss)

    ref = _reference_loss(X_s, X_t, M, Delta, phi_params, psi_params, sigma, 0.1)
    ref = jax.block_until_ready(ref)

    assert loss.shape == () and bool(jnp.isfinite(loss))
    assert jnp.allclose(loss, ref, rtol=5e-3, atol=1e-7), (float(loss), float(ref))
    print("KERNEL_OK")
</pallas_src>

<mosaic_0001>
module attributes {stable_mosaic.version = 11 : i64} {
  func.func @_embed_kernel(%arg0: i32, %arg1: memref<128x16xf32, #tpu.memory_space<vmem>>, %arg2: memref<16x8xf32, #tpu.memory_space<vmem>>, %arg3: memref<128x8xf32, #tpu.memory_space<vmem>>, %arg4: memref<8x32xf32, #tpu.memory_space<vmem>>, %arg5: memref<1x32xf32, #tpu.memory_space<vmem>>, %arg6: memref<1x32xf32, #tpu.memory_space<vmem>>, %arg7: memref<1x8xf32, #tpu.memory_space<vmem>>, %arg8: memref<1x1xf32, #tpu.memory_space<vmem>>, %arg9: memref<128x8xf32, #tpu.memory_space<vmem>>, %arg10: memref<128x1xf32, #tpu.memory_space<vmem>>, %arg11: memref<128x1xf32, #tpu.memory_space<vmem>>) attributes {dimension_semantics = [#tpu.dimension_semantics<parallel>], iteration_bounds = array<i64: 3>, scalar_prefetch = 0 : i64, scratch_operands = 0 : i64, tpu.core_type = #tpu.core_type<tc>, window_params = [{transform_indices = @transform_0, window_bounds = array<i64: 128, 16>}, {pipeline_mode = #tpu.pipeline_mode<synchronous>, transform_indices = @transform_1, window_bounds = array<i64: 16, 8>}, {transform_indices = @transform_2, window_bounds = array<i64: 128, 8>}, {pipeline_mode = #tpu.pipeline_mode<synchronous>, transform_indices = @transform_3, window_bounds = array<i64: 8, 32>}, {pipeline_mode = #tpu.pipeline_mode<synchronous>, transform_indices = @transform_4, window_bounds = array<i64: 1, 32>}, {pipeline_mode = #tpu.pipeline_mode<synchronous>, transform_indices = @transform_5, window_bounds = array<i64: 1, 32>}, {pipeline_mode = #tpu.pipeline_mode<synchronous>, transform_indices = @transform_6, window_bounds = array<i64: 1, 8>}, {pipeline_mode = #tpu.pipeline_mode<synchronous>, transform_indices = @transform_7, window_bounds = array<i64: 1, 1>}, {transform_indices = @transform_8, window_bounds = array<i64: 128, 8>}, {transform_indices = @transform_9, window_bounds = array<i64: 128, 1>}, {transform_indices = @transform_10, window_bounds = array<i64: 128, 1>}]} {
    %c0 = arith.constant 0 : index
    %c0_0 = arith.constant 0 : index
    %0 = vector.load %arg1[%c0, %c0_0] : memref<128x16xf32, #tpu.memory_space<vmem>>, vector<128x16xf32>
    %c0_1 = arith.constant 0 : index
    %c0_2 = arith.constant 0 : index
    %1 = vector.load %arg2[%c0_1, %c0_2] : memref<16x8xf32, #tpu.memory_space<vmem>>, vector<16x8xf32>
    %cst = arith.constant dense<0.000000e+00> : vector<128x8xf32>
    %2 = tpu.matmul %0, %1, %cst {dimension_numbers = #tpu.dot_dimension_numbers<[1], [0], [0], [1], [0, 0, 1, 1], [], []>} : vector<128x16xf32>, vector<16x8xf32>, vector<128x8xf32> -> vector<128x8xf32>
    %3 = arith.mulf %2, %2 : vector<128x8xf32>
    %cst_3 = arith.constant dense<0.000000e+00> : vector<128xf32>
    %4 = vector.multi_reduction <add>, %3, %cst_3 [1] : vector<128x8xf32> to vector<128xf32>
    %5 = vector.shape_cast %4 : vector<128xf32> to vector<128x1xf32>
    %6 = math.sqrt %5 : vector<128x1xf32>
    %cst_4 = arith.constant 9.99999993E-9 : f32
    %7 = vector.broadcast %cst_4 : f32 to vector<128x1xf32>
    %8 = arith.addf %6, %7 : vector<128x1xf32>
    %cst_5 = arith.constant 1.000000e+00 : f32
    %9 = vector.broadcast %cst_5 : f32 to vector<128x1xf32>
    %10 = arith.divf %9, %8 : vector<128x1xf32>
    %11 = vector.broadcast %10 : vector<128x1xf32> to vector<128x8xf32>
    %12 = arith.mulf %2, %11 : vector<128x8xf32>
    %c0_6 = arith.constant 0 : index
    %c0_7 = arith.constant 0 : index
    %13 = vector.load %arg3[%c0_6, %c0_7] : memref<128x8xf32, #tpu.memory_space<vmem>>, vector<128x8xf32>
    %14 = arith.addf %12, %13 : vector<128x8xf32>
    %c0_8 = arith.constant 0 : index
    %c0_9 = arith.constant 0 : index
    %15 = vector.load %arg9[%c0_8, %c0_9] : memref<128x8xf32, #tpu.memory_space<vmem>>, vector<128x8xf32>
    tpu.vector_store %arg9[%c0_8, %c0_9], %14 {strides = array<i32>} : memref<128x8xf32, #tpu.memory_space<vmem>>, vector<128x8xf32>,
    %16 = arith.mulf %14, %14 : vector<128x8xf32>
    %cst_10 = arith.constant dense<0.000000e+00> : vector<128xf32>
    %17 = vector.multi_reduction <add>, %16, %cst_10 [1] : vector<128x8xf32> to vector<128xf32>
    %18 = vector.shape_cast %17 : vector<128xf32> to vector<128x1xf32>
    %c0_11 = arith.constant 0 : index
    %c0_12 = arith.constant 0 : index
    %19 = vector.load %arg11[%c0_11, %c0_12] : memref<128x1xf32, #tpu.memory_space<vmem>>, vector<128x1xf32>
    tpu.vector_store %arg11[%c0_11, %c0_12], %18 {strides = array<i32>} : memref<128x1xf32, #tpu.memory_space<vmem>>, vector<128x1xf32>,
    %c0_13 = arith.constant 0 : index
    %c0_14 = arith.constant 0 : index
    %20 = vector.load %arg4[%c0_13, %c0_14] : memref<8x32xf32, #tpu.memory_space<vmem>>, vector<8x32xf32>
    %cst_15 = arith.constant dense<0.000000e+00> : vector<128x32xf32>
    %21 = tpu.matmul %14, %20, %cst_15 {dimension_numbers = #tpu.dot_dimension_numbers<[1], [0], [0], [1], [0, 0, 1, 1], [], []>} : vector<128x8xf32>, vector<8x32xf32>, vector<128x32xf32> -> vector<128x32xf32>
    %c0_16 = arith.constant 0 : index
    %c0_17 = arith.constant 0 : index
    %22 = vector.load %arg5[%c0_16, %c0_17] : memref<1x32xf32, #tpu.memory_space<vmem>>, vector<1x32xf32>
    %23 = vector.broadcast %22 : vector<1x32xf32> to vector<128x32xf32>
    %24 = arith.addf %21, %23 : vector<128x32xf32>
    %cst_18 = arith.constant 0.000000e+00 : f32
    %25 = vector.broadcast %cst_18 : f32 to vector<128x32xf32>
    %26 = arith.cmpf ogt, %24, %25 : vector<128x32xf32>
    %cst_19 = arith.constant 2.000000e-01 : f32
    %27 = vector.broadcast %cst_19 : f32 to vector<128x32xf32>
    %28 = arith.mulf %27, %24 : vector<128x32xf32>
    %29 = arith.select %26, %24, %28 : vector<128x32xi1>, vector<128x32xf32>
    %30 = arith.mulf %29, %29 : vector<128x32xf32>
    %c0_20 = arith.constant 0 : index
    %c0_21 = arith.constant 0 : index
    %31 = vector.load %arg6[%c0_20, %c0_21] : memref<1x32xf32, #tpu.memory_space<vmem>>, vector<1x32xf32>
    %32 = vector.broadcast %31 : vector<1x32xf32> to vector<128x32xf32>
    %33 = arith.mulf %30, %32 : vector<128x32xf32>
    %cst_22 = arith.constant dense<0.000000e+00> : vector<128xf32>
    %34 = vector.multi_reduction <add>, %33, %cst_22 [1] : vector<128x32xf32> to vector<128xf32>
    %35 = vector.shape_cast %34 : vector<128xf32> to vector<128x1xf32>
    %c0_23 = arith.constant 0 : index
    %c0_24 = arith.constant 0 : index
    %36 = vector.load %arg7[%c0_23, %c0_24] : memref<1x8xf32, #tpu.memory_space<vmem>>, vector<1x8xf32>
    %37 = vector.broadcast %36 : vector<1x8xf32> to vector<128x8xf32>
    %38 = arith.mulf %14, %37 : vector<128x8xf32>
    %cst_25 = arith.constant dense<0.000000e+00> : vector<128xf32>
    %39 = vector.multi_reduction <add>, %38, %cst_25 [1] : vector<128x8xf32> to vector<128xf32>
    %40 = vector.shape_cast %39 : vector<128xf32> to vector<128x1xf32>
    %41 = arith.addf %35, %40 : vector<128x1xf32>
    %c0_26 = arith.constant 0 : index
    %c0_27 = arith.constant 0 : index
    %42 = vector.load %arg8[%c0_26, %c0_27] : memref<1x1xf32, #tpu.memory_space<vmem>>, vector<1x1xf32>
    %43 = vector.broadcast %42 : vector<1x1xf32> to vector<128x1xf32>
    %44 = arith.addf %41, %43 : vector<128x1xf32>
    %cst_28 = arith.constant 9.99999974E-5 : f32
    %45 = vector.broadcast %cst_28 : f32 to vector<128x1xf32>
    %46 = arith.mulf %44, %45 : vector<128x1xf32>
    %c0_29 = arith.constant 0 : index
    %c0_30 = arith.constant 0 : index
    %47 = vector.load %arg10[%c0_29, %c0_30] : memref<128x1xf32, #tpu.memory_space<vmem>>, vector<128x1xf32>
    tpu.vector_store %arg10[%c0_29, %c0_30], %46 {strides = array<i32>} : memref<128x1xf32, #tpu.memory_space<vmem>>, vector<128x1xf32>,
    return
  }
  func.func @transform_0(%arg0: i32) -> (i32, i32) {
    %c0_i32 = arith.constant 0 : i32
    %c0_i32_0 = arith.constant 0 : i32
    return %arg0, %c0_i32 : i32, i32
  }
  func.func @transform_1(%arg0: i32) -> (i32, i32) {
    %c0_i32 = arith.constant 0 : i32
    %c0_i32_0 = arith.constant 0 : i32
    %c0_i32_1 = arith.constant 0 : i32
    return %c0_i32, %c0_i32_0 : i32, i32
  }
  func.func @transform_2(%arg0: i32) -> (i32, i32) {
    %c0_i32 = arith.constant 0 : i32
    %c0_i32_0 = arith.constant 0 : i32
    return %arg0, %c0_i32 : i32, i32
  }
  func.func @transform_3(%arg0: i32) -> (i32, i32) {
    %c0_i32 = arith.constant 0 : i32
    %c0_i32_0 = arith.constant 0 : i32
    %c0_i32_1 = arith.constant 0 : i32
    return %c0_i32, %c0_i32_0 : i32, i32
  }
  func.func @transform_4(%arg0: i32) -> (i32, i32) {
    %c0_i32 = arith.constant 0 : i32
    %c0_i32_0 = arith.constant 0 : i32
    %c0_i32_1 = arith.constant 0 : i32
    return %c0_i32, %c0_i32_0 : i32, i32
  }
  func.func @transform_5(%arg0: i32) -> (i32, i32) {
    %c0_i32 = arith.constant 0 : i32
    %c0_i32_0 = arith.constant 0 : i32
    %c0_i32_1 = arith.constant 0 : i32
    return %c0_i32, %c0_i32_0 : i32, i32
  }
  func.func @transform_6(%arg0: i32) -> (i32, i32) {
    %c0_i32 = arith.constant 0 : i32
    %c0_i32_0 = arith.constant 0 : i32
    %c0_i32_1 = arith.constant 0 : i32
    return %c0_i32, %c0_i32_0 : i32, i32
  }
  func.func @transform_7(%arg0: i32) -> (i32, i32) {
    %c0_i32 = arith.constant 0 : i32
    %c0_i32_0 = arith.constant 0 : i32
    %c0_i32_1 = arith.constant 0 : i32
    return %c0_i32, %c0_i32_0 : i32, i32
  }
  func.func @transform_8(%arg0: i32) -> (i32, i32) {
    %c0_i32 = arith.constant 0 : i32
    %c0_i32_0 = arith.constant 0 : i32
    return %arg0, %c0_i32 : i32, i32
  }
  func.func @transform_9(%arg0: i32) -> (i32, i32) {
    %c0_i32 = arith.constant 0 : i32
    %c0_i32_0 = arith.constant 0 : i32
    return %arg0, %c0_i32 : i32, i32
  }
  func.func @transform_10(%arg0: i32) -> (i32, i32) {
    %c0_i32 = arith.constant 0 : i32
    %c0_i32_0 = arith.constant 0 : i32
    return %arg0, %c0_i32 : i32, i32
  }
}

</mosaic_0001>

<llo_original>
// kernel: tpu_custom_call.1
$region0: #{tpu_custom_call.1}
  #allocation0 [shape = 'u32[]', space=smem, size = 0x4, offset = 0x4, fixed_abs, tag = 'smem constant byte address 0x4 - core index']
  #allocation1 [shape = 'u32[72,128]{1,0:T(1,128)}', space=vmem, size = 0x9000, scoped, tag = 'internal scratch']
  #allocation2 [shape = 'f32[1,1]{1,0:T(1,128)S(1)}', space=vmem, size = 0x200, scoped, tag = 'scoped memory for tpu_custom_call.1']
  %s0 = inlined_call_operand.vmem [shape: f32[384,16], index: 0, kind: input, shape index: {}]
  %s1 = inlined_call_operand.vmem [shape: f32[16,8], index: 1, kind: input, shape index: {}]
  %s2 = inlined_call_operand.vmem [shape: f32[384,8], index: 2, kind: input, shape index: {}]
  %s3 = inlined_call_operand.vmem [shape: f32[8,32], index: 3, kind: input, shape index: {}]
  %s4 = inlined_call_operand.vmem [shape: f32[1,32], index: 4, kind: input, shape index: {}]
  %s5 = inlined_call_operand.vmem [shape: f32[1,32], index: 5, kind: input, shape index: {}]
  %s6 = inlined_call_operand.vmem [shape: f32[1,8], index: 6, kind: input, shape index: {}]
  %s7 = inlined_call_operand.<no memory space> [shape: f32[1,1], index: 7, kind: input, shape index: {}]
  %s8 = inlined_call_operand.vmem [shape: f32[384,8], index: 8, kind: output, shape index: {0}]
  %s9 = inlined_call_operand.vmem [shape: f32[384,1], index: 9, kind: output, shape index: {1}]
  %s10 = inlined_call_operand.vmem [shape: f32[384,1], index: 10, kind: output, shape index: {2}]
  %11 = xla_tuple %s8, %s9, %s10
  %s12 = sld [smem:[#allocation0]]
  $region81: #{tpu_custom_call.1} parent=0
    _
  %s14 = ssub.s32 1, %s12
  %s15 = scalar_select 0, %s14, %s12
  %v16 = vstv %s7
  %17 = vst [vmem:[#allocation2] sm:$0x1] %v16
  loop: start=0, step=1, limit=5
  $region2: #{tpu_custom_call.1} parent=0 // loop_pre_header
    _
  $region3: #{tpu_custom_call.1} parent=0 // loop_header
    %s19 = sphi 0, %s23
    %p20 = scmp.ge.s32.totalorder %s19, 5
    %s29 = sphi 0, %s31
    %s32 = sphi 0, %s29
    %s33 = sphi 0, %s32
    %s49 = sphi 0, %s33
    %s53 = sphi 0, %s53
    %s55 = sphi 0, %s53
    %s56 = sphi 0, %s55
    %s70 = sphi 0, %s56
    %s76 = sphi 0, %s78
    %s79 = sphi 0, %s76
    %s80 = sphi 0, %s79
    %s96 = sphi 0, %s80
    %s100 = sphi 0, %s100
    %s102 = sphi 0, %s100
    %s103 = sphi 0, %s102
    %s117 = sphi 0, %s103
    %s121 = sphi 0, %s121
    %s123 = sphi 0, %s121
    %s124 = sphi 0, %s123
    %s138 = sphi 0, %s124
    %s142 = sphi 0, %s142
    %s144 = sphi 0, %s142
    %s145 = sphi 0, %s144
    %s159 = sphi 0, %s145
    %s163 = sphi 0, %s163
    %s165 = sphi 0, %s163
    %s166 = sphi 0, %s165
    %s180 = sphi 0, %s166
    %s184 = sphi 0, %s184
    %s186 = sphi 0, %s184
    %s187 = sphi 0, %s186
    %s201 = sphi 0, %s187
    %s207 = sphi 0, %s209
    %s210 = sphi 0, %s207
    %s211 = sphi 0, %s210
    %s227 = sphi 0, %s211
    %s233 = sphi 0, %s235
    %s236 = sphi 0, %s233
    %s237 = sphi 0, %s236
    %s253 = sphi 0, %s237
    %s259 = sphi 0, %s261
    %s262 = sphi 0, %s259
    %s263 = sphi 0, %s262
    %s279 = sphi 0, %s263
  $region4: #{tpu_custom_call.1} parent=0 // loop_header_branch
    %22 = sbr.rel (%p20) target = $region8
  $region5: #{tpu_custom_call.1} parent=0 // loop_body
    %s24 = ssub.s32 %s19, 1
    %s25 = ssub.s32 %s19, 2
    %s26 = sadd.s32 %s19, 1
    %s27 = ssub.s32 %s19, %s26
    %p28 = scmp.eq.s32.totalorder %s27, 0
    %s30 = sadd.s32 %s29, 1
    %s31 = scalar_select %p28, %s29, %s30
    %p34 = pneg %p28
    %p35 = scmp.eq.s32.totalorder %s19, 2
    %p36 = por %p34, %p35
    %p37 = scmp.ne.s32.totalorder %s29, %s32
    %p38 = scmp.eq.s32.totalorder %s19, 0
    %p39 = por %p37, %p38
    %p40 = scmp.ne.s32.totalorder %s29, %s32
    %p41 = scmp.eq.s32.totalorder %s24, 2
    %p42 = por %p40, %p41
    %p43 = scmp.ne.s32.totalorder %s32, %s33
    %p44 = scmp.eq.s32.totalorder %s24, 0
    %p45 = por %p43, %p44
    %p46 = scmp.ne.s32.totalorder %s32, %s33
    %p47 = scmp.eq.s32.totalorder %s25, 2
    %p48 = por %p46, %p47
    %p50 = scmp.ne.s32.totalorder %s33, %s49
    %p51 = scmp.eq.s32.totalorder %s25, 0
    %p52 = por %p50, %p51
    %s54 = sadd.s32 %s53, 1
    %p57 = scmp.eq.s32.totalorder %s19, 2
    %p58 = scmp.ne.s32.totalorder %s53, %s55
    %p59 = scmp.eq.s32.totalorder %s19, 0
    %p60 = por %p58, %p59
    %p61 = scmp.ne.s32.totalorder %s53, %s55
    %p62 = scmp.eq.s32.totalorder %s24, 2
    %p63 = por %p61, %p62
    %p64 = scmp.ne.s32.totalorder %s55, %s56
    %p65 = scmp.eq.s32.totalorder %s24, 0
    %p66 = por %p64, %p65
    %p67 = scmp.ne.s32.totalorder %s55, %s56
    %p68 = scmp.eq.s32.totalorder %s25, 2
    %p69 = por %p67, %p68
    %p71 = scmp.ne.s32.totalorder %s56, %s70
    %p72 = scmp.eq.s32.totalorder %s25, 0
    %p73 = por %p71, %p72
    %s74 = ssub.s32 %s19, %s26
    %p75 = scmp.eq.s32.totalorder %s74, 0
    %s77 = sadd.s32 %s76, 1
    %s78 = scalar_select %p75, %s76, %s77
    %p81 = pneg %p75
    %p82 = scmp.eq.s32.totalorder %s19, 2
    %p83 = por %p81, %p82
    %p84 = scmp.ne.s32.totalorder %s76, %s79
    %p85 = scmp.eq.s32.totalorder %s19, 0
    %p86 = por %p84, %p85
    %p87 = scmp.ne.s32.totalorder %s76, %s79
    %p88 = scmp.eq.s32.totalorder %s24, 2
    %p89 = por %p87, %p88
    %p90 = scmp.ne.s32.totalorder %s79, %s80
    %p91 = scmp.eq.s32.totalorder %s24, 0
    %p92 = por %p90, %p91
    %p93 = scmp.ne.s32.totalorder %s79, %s80
    %p94 = scmp.eq.s32.totalorder %s25, 2
    %p95 = por %p93, %p94
    %p97 = scmp.ne.s32.totalorder %s80, %s96
    %p98 = scmp.eq.s32.totalorder %s25, 0
    %p99 = por %p97, %p98
    %s101 = sadd.s32 %s100, 1
    %p104 = scmp.eq.s32.totalorder %s19, 2
    %p105 = scmp.ne.s32.totalorder %s100, %s102
    %p106 = scmp.eq.s32.totalorder %s19, 0
    %p107 = por %p105, %p106
    %p108 = scmp.ne.s32.totalorder %s100, %s102
    %p109 = scmp.eq.s32.totalorder %s24, 2
    %p110 = por %p108, %p109
    %p111 = scmp.ne.s32.totalorder %s102, %s103
    %p112 = scmp.eq.s32.totalorder %s24, 0
    %p113 = por %p111, %p112
    %p114 = scmp.ne.s32.totalorder %s102, %s103
    %p115 = scmp.eq.s32.totalorder %s25, 2
    %p116 = por %p114, %p115
    %p118 = scmp.ne.s32.totalorder %s103, %s117
    %p119 = scmp.eq.s32.totalorder %s25, 0
    %p120 = por %p118, %p119
    %s122 = sadd.s32 %s121, 1
    %p125 = scmp.eq.s32.totalorder %s19, 2
    %p126 = scmp.ne.s32.totalorder %s121, %s123
    %p127 = scmp.eq.s32.totalorder %s19, 0
    %p128 = por %p126, %p127
    %p129 = scmp.ne.s32.totalorder %s121, %s123
    %p130 = scmp.eq.s32.totalorder %s24, 2
    %p131 = por %p129, %p130
    %p132 = scmp.ne.s32.totalorder %s123, %s124
    %p133 = scmp.eq.s32.totalorder %s24, 0
    %p134 = por %p132, %p133
    %p135 = scmp.ne.s32.totalorder %s123, %s124
    %p136 = scmp.eq.s32.totalorder %s25, 2
    %p137 = por %p135, %p136
    %p139 = scmp.ne.s32.totalorder %s124, %s138
    %p140 = scmp.eq.s32.totalorder %s25, 0
    %p141 = por %p139, %p140
    %s143 = sadd.s32 %s142, 1
    %p146 = scmp.eq.s32.totalorder %s19, 2
    %p147 = scmp.ne.s32.totalorder %s142, %s144
    %p148 = scmp.eq.s32.totalorder %s19, 0
    %p149 = por %p147, %p148
    %p150 = scmp.ne.s32.totalorder %s142, %s144
    %p151 = scmp.eq.s32.totalorder %s24, 2
    %p152 = por %p150, %p151
    %p153 = scmp.ne.s32.totalorder %s144, %s145
    %p154 = scmp.eq.s32.totalorder %s24, 0
    %p155 = por %p153, %p154
    %p156 = scmp.ne.s32.totalorder %s144, %s145
    %p157 = scmp.eq.s32.totalorder %s25, 2
    %p158 = por %p156, %p157
    %p160 = scmp.ne.s32.totalorder %s145, %s159
    %p161 = scmp.eq.s32.totalorder %s25, 0
    %p162 = por %p160, %p161
    %s164 = sadd.s32 %s163, 1
    %p167 = scmp.eq.s32.totalorder %s19, 2
    %p168 = scmp.ne.s32.totalorder %s163, %s165
    %p169 = scmp.eq.s32.totalorder %s19, 0
    %p170 = por %p168, %p169
    %p171 = scmp.ne.s32.totalorder %s163, %s165
    %p172 = scmp.eq.s32.totalorder %s24, 2
    %p173 = por %p171, %p172
    %p174 = scmp.ne.s32.totalorder %s165, %s166
    %p175 = scmp.eq.s32.totalorder %s24, 0
    %p176 = por %p174, %p175
    %p177 = scmp.ne.s32.totalorder %s165, %s166
    %p178 = scmp.eq.s32.totalorder %s25, 2
    %p179 = por %p177, %p178
    %p181 = scmp.ne.s32.totalorder %s166, %s180
    %p182 = scmp.eq.s32.totalorder %s25, 0
    %p183 = por %p181, %p182
    %s185 = sadd.s32 %s184, 1
    %p188 = scmp.eq.s32.totalorder %s19, 2
    %p189 = scmp.ne.s32.totalorder %s184, %s186
    %p190 = scmp.eq.s32.totalorder %s19, 0
    %p191 = por %p189, %p190
    %p192 = scmp.ne.s32.totalorder %s184, %s186
    %p193 = scmp.eq.s32.totalorder %s24, 2
    %p194 = por %p192, %p193
    %p195 = scmp.ne.s32.totalorder %s186, %s187
    %p196 = scmp.eq.s32.totalorder %s24, 0
    %p197 = por %p195, %p196
    %p198 = scmp.ne.s32.totalorder %s186, %s187
    %p199 = scmp.eq.s32.totalorder %s25, 2
    %p200 = por %p198, %p199
    %p202 = scmp.ne.s32.totalorder %s187, %s201
    %p203 = scmp.eq.s32.totalorder %s25, 0
    %p204 = por %p202, %p203
    %s205 = ssub.s32 %s19, %s26
    %p206 = scmp.eq.s32.totalorder %s205, 0
    %s208 = sadd.s32 %s207, 1
    %s209 = scalar_select %p206, %s207, %s208
    %p212 = pneg %p206
    %p213 = scmp.eq.s32.totalorder %s19, 2
    %p214 = por %p212, %p213
    %p215 = scmp.ne.s32.totalorder %s207, %s210
    %p216 = scmp.eq.s32.totalorder %s19, 0
    %p217 = por %p215, %p216
    %p218 = scmp.ne.s32.totalorder %s207, %s210
    %p219 = scmp.eq.s32.totalorder %s24, 2
    %p220 = por %p218, %p219
    %p221 = scmp.ne.s32.totalorder %s210, %s211
    %p222 = scmp.eq.s32.totalorder %s24, 0
    %p223 = por %p221, %p222
    %p224 = scmp.ne.s32.totalorder %s210, %s211
    %p225 = scmp.eq.s32.totalorder %s25, 2
    %p226 = por %p224, %p225
    %p228 = scmp.ne.s32.totalorder %s211, %s227
    %p229 = scmp.eq.s32.totalorder %s25, 0
    %p230 = por %p228, %p229
    %s231 = ssub.s32 %s19, %s26
    %p232 = scmp.eq.s32.totalorder %s231, 0
    %s234 = sadd.s32 %s233, 1
    %s235 = scalar_select %p232, %s233, %s234
    %p238 = pneg %p232
    %p239 = scmp.eq.s32.totalorder %s19, 2
    %p240 = por %p238, %p239
    %p241 = scmp.ne.s32.totalorder %s233, %s236
    %p242 = scmp.eq.s32.totalorder %s19, 0
    %p243 = por %p241, %p242
    %p244 = scmp.ne.s32.totalorder %s233, %s236
    %p245 = scmp.eq.s32.totalorder %s24, 2
    %p246 = por %p244, %p245
    %p247 = scmp.ne.s32.totalorder %s236, %s237
    %p248 = scmp.eq.s32.totalorder %s24, 0
    %p249 = por %p247, %p248
    %p250 = scmp.ne.s32.totalorder %s236, %s237
    %p251 = scmp.eq.s32.totalorder %s25, 2
    %p252 = por %p250, %p251
    %p254 = scmp.ne.s32.totalorder %s237, %s253
    %p255 = scmp.eq.s32.totalorder %s25, 0
    %p256 = por %p254, %p255
    %s257 = ssub.s32 %s19, %s26
    %p258 = scmp.eq.s32.totalorder %s257, 0
    %s260 = sadd.s32 %s259, 1
    %s261 = scalar_select %p258, %s259, %s260
    %p264 = pneg %p258
    %p265 = scmp.eq.s32.totalorder %s19, 2
    %p266 = por %p264, %p265
    %p267 = scmp.ne.s32.totalorder %s259, %s262
    %p268 = scmp.eq.s32.totalorder %s19, 0
    %p269 = por %p267, %p268
    %p270 = scmp.ne.s32.totalorder %s259, %s262
    %p271 = scmp.eq.s32.totalorder %s24, 2
    %p272 = por %p270, %p271
    %p273 = scmp.ne.s32.totalorder %s262, %s263
    %p274 = scmp.eq.s32.totalorder %s24, 0
    %p275 = por %p273, %p274
    %p276 = scmp.ne.s32.totalorder %s262, %s263
    %p277 = scmp.eq.s32.totalorder %s25, 2
    %p278 = por %p276, %p277
    %p280 = scmp.ne.s32.totalorder %s263, %s279
    %p281 = scmp.eq.s32.totalorder %s25, 0
    %p282 = por %p280, %p281
    %p283 = scmp.le.s32.totalorder 1, %s19
    %p284 = scmp.lt.s32.totalorder %s19, 4
    %p285 = pnand %p283, %p284
    %p286 = pneg %p285
    // Predicated region
    $region9: #{tpu_custom_call.1} parent=5 // pred_check
      _
    $region10: #{tpu_custom_call.1} parent=5 // pred_check_branch
      %288 = sbr.rel (%p285) target = $region12
    $region11: #{tpu_custom_call.1} parent=5 // pred_region
      %s289 = ssub.s32 %s19, 1
      // Predicated region
      $region13: #{tpu_custom_call.1} parent=11 // pred_check
        %p290 = pneg %p66
      $region14: #{tpu_custom_call.1} parent=11 // pred_check_branch
        %292 = sbr.rel (%p290) target = $region16
      $region15: #{tpu_custom_call.1} parent=11 // pred_region
        _
      $region16: #{tpu_custom_call.1} parent=11 // pred_fallthru
        _
      // Predicated region
      $region17: #{tpu_custom_call.1} parent=11 // pred_check
        %p293 = pneg %p113
      $region18: #{tpu_custom_call.1} parent=11 // pred_check_branch
        %295 = sbr.rel (%p293) target = $region20
      $region19: #{tpu_custom_call.1} parent=11 // pred_region
        _
      $region20: #{tpu_custom_call.1} parent=11 // pred_fallthru
        _
      // Predicated region
      $region21: #{tpu_custom_call.1} parent=11 // pred_check
        %p296 = pneg %p134
      $region22: #{tpu_custom_call.1} parent=11 // pred_check_branch
        %298 = sbr.rel (%p296) target = $region24
      $region23: #{tpu_custom_call.1} parent=11 // pred_region
        _
      $region24: #{tpu_custom_call.1} parent=11 // pred_fallthru
        _
      // Predicated region
      $region25: #{tpu_custom_call.1} parent=11 // pred_check
        %p299 = pneg %p155
      $region26: #{tpu_custom_call.1} parent=11 // pred_check_branch
        %301 = sbr.rel (%p299) target = $region28
      $region27: #{tpu_custom_call.1} parent=11 // pred_region
        _
      $region28: #{tpu_custom_call.1} parent=11 // pred_fallthru
        _
      // Predicated region
      $region29: #{tpu_custom_call.1} parent=11 // pred_check
        %p302 = pneg %p176
      $region30: #{tpu_custom_call.1} parent=11 // pred_check_branch
        %304 = sbr.rel (%p302) target = $region32
      $region31: #{tpu_custom_call.1} parent=11 // pred_region
        _
      $region32: #{tpu_custom_call.1} parent=11 // pred_fallthru
        _
      // Predicated region
      $region33: #{tpu_custom_call.1} parent=11 // pred_check
        %p305 = pneg %p197
      $region34: #{tpu_custom_call.1} parent=11 // pred_check_branch
        %307 = sbr.rel (%p305) target = $region36
      $region35: #{tpu_custom_call.1} parent=11 // pred_region
        _
      $region36: #{tpu_custom_call.1} parent=11 // pred_fallthru
        _
    $region12: #{tpu_custom_call.1} parent=5 // pred_fallthru
      _
    %p308 = scmp.lt.s32.totalorder %s19, 3
    // Predicated region
    $region37: #{tpu_custom_call.1} parent=5 // pred_check
      %p309 = pneg %p308
    $region38: #{tpu_custom_call.1} parent=5 // pred_check_branch
      %311 = sbr.rel (%p309) target = $region40
    $region39: #{tpu_custom_call.1} parent=5 // pred_region
      // Predicated region
      $region41: #{tpu_custom_call.1} parent=39 // pred_check
        %p312 = pneg %p39
      $region42: #{tpu_custom_call.1} parent=39 // pred_check_branch
        %314 = sbr.rel (%p312) target = $region44
      $region43: #{tpu_custom_call.1} parent=39 // pred_region
        %s315 = smul.u32 16, %s19
        %p316 = scmp.lt.s32.totalorder %s315, 47
        %s317 = scalar_select %p316, %s315, 47
        %s318 = smul.addr %s317, 8
        %s319 = scalar_lea.vmem %s0, %s318
        %s320 = smul.u32 16, %s19
      $region44: #{tpu_custom_call.1} parent=39 // pred_fallthru
        _
      // Predicated region
      $region45: #{tpu_custom_call.1} parent=39 // pred_check
        %p321 = pneg %p86
      $region46: #{tpu_custom_call.1} parent=39 // pred_check_branch
        %323 = sbr.rel (%p321) target = $region48
      $region47: #{tpu_custom_call.1} parent=39 // pred_region
        %s324 = smul.u32 16, %s19
        %p325 = scmp.lt.s32.totalorder %s324, 47
        %s326 = scalar_select %p325, %s324, 47
        %s327 = smul.addr %s326, 8
        %s328 = scalar_lea.vmem %s2, %s327
        %s329 = smul.u32 16, %s19
      $region48: #{tpu_custom_call.1} parent=39 // pred_fallthru
        _
    $region40: #{tpu_custom_call.1} parent=5 // pred_fallthru
      _
    %p330 = scmp.le.s32.totalorder 1, %s19
    %p331 = scmp.lt.s32.totalorder %s19, 4
    %p332 = pnand %p330, %p331
    %p333 = pneg %p332
    // Predicated region
    $region49: #{tpu_custom_call.1} parent=5 // pred_check
      _
    $region50: #{tpu_custom_call.1} parent=5 // pred_check_branch
      %335 = sbr.rel (%p332) target = $region52
    $region51: #{tpu_custom_call.1} parent=5 // pred_region
      %s336 = ssub.s32 %s19, 1
      %s337 = smul.u32 16, %s24
      %p338 = scmp.lt.s32.totalorder %s337, 47
      %s339 = scalar_select %p338, %s337, 47
      %s340 = smul.addr %s339, 8
      %s341 = scalar_lea.vmem %s0, %s340
      %p342 = pneg %p45
      %p343 = pneg %p42
      %p344 = pneg %p66
      %p345 = pneg %p63
      %s346 = smul.u32 16, %s24
      %p347 = scmp.lt.s32.totalorder %s346, 47
      %s348 = scalar_select %p347, %s346, 47
      %s349 = smul.addr %s348, 8
      %s350 = scalar_lea.vmem %s2, %s349
      %p351 = pneg %p92
      %p352 = pneg %p89
      %p353 = pneg %p113
      %p354 = pneg %p110
      %p355 = pneg %p134
      %p356 = pneg %p131
      %p357 = pneg %p155
      %p358 = pneg %p152
      %p359 = pneg %p176
      %p360 = pneg %p173
      %p361 = pneg %p197
      %p362 = pneg %p194
      %p363 = pneg %p223
      %p364 = pneg %p220
      %s365 = smul.u32 16, %s24
      %p366 = scmp.lt.s32.totalorder %s365, 47
      %s367 = scalar_select %p366, %s365, 47
      %s368 = smul.addr %s367, 8
      %s369 = scalar_lea.vmem %s8, %s368
      %p370 = pneg %p249
      %p371 = pneg %p246
      %s372 = smul.u32 16, %s24
      %p373 = scmp.lt.s32.totalorder %s372, 47
      %s374 = scalar_select %p373, %s372, 47
      %s375 = smul.addr %s374, 8
      %s376 = scalar_lea.vmem %s9, %s375
      %p377 = pneg %p275
      %p378 = pneg %p272
      %s379 = smul.u32 16, %s24
      %p380 = scmp.lt.s32.totalorder %s379, 47
      %s381 = scalar_select %p380, %s379, 47
      %s382 = smul.addr %s381, 8
      %s383 = scalar_lea.vmem %s10, %s382
      %s384 = smul.u32 16, %s24
      %p385 = scmp.lt.s32.totalorder %s384, 47
      %s386 = scalar_select %p385, %s384, 47
      %s387 = smul.addr %s386, 8
      %s388 = scalar_lea.vmem %s0, %s387
      %s389 = smul.u32 16, %s24
      %s390 = smul.u32 16, %s24
      %p391 = scmp.lt.s32.totalorder %s390, 47
      %s392 = scalar_select %p391, %s390, 47
      %s393 = smul.addr %s392, 8
      %s394 = scalar_lea.vmem %s2, %s393
      %s395 = smul.u32 16, %s24
      %s396 = smul.u32 16, %s24
      %p397 = scmp.lt.s32.totalorder %s396, 47
      %s398 = scalar_select %p397, %s396, 47
      %s399 = smul.addr %s398, 8
      %s400 = scalar_lea.vmem %s8, %s399
      %s401 = smul.u32 16, %s24
      %s402 = smul.u32 16, %s24
      %p403 = scmp.lt.s32.totalorder %s402, 47
      %s404 = scalar_select %p403, %s402, 47
      %s405 = smul.addr %s404, 8
      %s406 = scalar_lea.vmem %s9, %s405
      %s407 = smul.u32 16, %s24
      %s408 = smul.u32 16, %s24
      %p409 = scmp.lt.s32.totalorder %s408, 47
      %s410 = scalar_select %p409, %s408, 47
      %s411 = smul.addr %s410, 8
      %s412 = scalar_lea.vmem %s10, %s411
      %s413 = smul.u32 16, %s24
      %v414 = vld [vmem:[%s388] sm:$0xff]
      %v415 = vld [vmem:[%s388 + $0x8] sm:$0xff]
      %v416 = vld [vmem:[%s388 + $0x10] sm:$0xff]
      %v417 = vld [vmem:[%s388 + $0x18] sm:$0xff]
      %v418 = vld [vmem:[%s388 + $0x20] sm:$0xff]
      %v419 = vld [vmem:[%s388 + $0x28] sm:$0xff]
      %v420 = vld [vmem:[%s388 + $0x30] sm:$0xff]
      %v421 = vld [vmem:[%s388 + $0x38] sm:$0xff]
      %v422 = vld [vmem:[%s388 + $0x40] sm:$0xff]
      %v423 = vld [vmem:[%s388 + $0x48] sm:$0xff]
      %v424 = vld [vmem:[%s388 + $0x50] sm:$0xff]
      %v425 = vld [vmem:[%s388 + $0x58] sm:$0xff]
      %v426 = vld [vmem:[%s388 + $0x60] sm:$0xff]
      %v427 = vld [vmem:[%s388 + $0x68] sm:$0xff]
      %v428 = vld [vmem:[%s388 + $0x70] sm:$0xff]
      %v429 = vld [vmem:[%s388 + $0x78] sm:$0xff]
      %v430 = vld [vmem:[%s1] sm:$0xff]
      %v431 = vld [vmem:[%s1 + $0x8] sm:$0xff]
      %vm432 = vcmask 130048
      %v434 = vsel %vm432, %v414, 0
      %v437 = vsel %vm432, %v415, 0
      %v440 = vsel %vm432, %v416, 0
      %v443 = vsel %vm432, %v417, 0
      %v446 = vsel %vm432, %v418, 0
      %v449 = vsel %vm432, %v419, 0
      %v452 = vsel %vm432, %v420, 0
      %v455 = vsel %vm432, %v421, 0
      %v458 = vsel %vm432, %v422, 0
      %v461 = vsel %vm432, %v423, 0
      %v464 = vsel %vm432, %v424, 0
      %v467 = vsel %vm432, %v425, 0
      %v470 = vsel %vm432, %v426, 0
      %v473 = vsel %vm432, %v427, 0
      %v476 = vsel %vm432, %v428, 0
      %v479 = vsel %vm432, %v429, 0
      %481 = vmatpush.msra.mxu0 0.0
      %482 = vmatpush.msra.mxu0 0.0
      %483 = vmatpush.msra.mxu0 0.0
      %484 = vmatpush.msra.mxu0 0.0
      %485 = vmatpush.msra.mxu0 0.0
      %486 = vmatpush.msra.mxu0 0.0
      %487 = vmatpush.msra.mxu0 0.0
      %488 = vmatpush.msra.mxu0 0.0
      %489 = vmatpush.msra.mxu0 0.0
      %490 = vmatpush.msra.mxu0 0.0
      %491 = vmatpush.msra.mxu0 0.0
      %492 = vmatpush.msra.mxu0 0.0
      %493 = vmatpush.msra.mxu0 0.0
      %494 = vmatpush.msra.mxu0 0.0
      %495 = vmatpush.msra.mxu0 %v431
      %496 = vmatpush.msra.mxu0 %v430
      %497 = vmatmul.f32.gmra.mxu0 %v434
      %v498 = vpop.f32.mrf.mxu0
      %v499 = vadd.f32 0.0, %v498
      %500 = vmatmul.f32.gmra.mxu0 %v437
      %v501 = vpop.f32.mrf.mxu0
      %v502 = vadd.f32 0.0, %v501
      %503 = vmatmul.f32.gmra.mxu0 %v440
      %v504 = vpop.f32.mrf.mxu0
      %v505 = vadd.f32 0.0, %v504
      %506 = vmatmul.f32.gmra.mxu0 %v443
      %v507 = vpop.f32.mrf.mxu0
      %v508 = vadd.f32 0.0, %v507
      %509 = vmatmul.f32.gmra.mxu0 %v446
      %v510 = vpop.f32.mrf.mxu0
      %v511 = vadd.f32 0.0, %v510
      %512 = vmatmul.f32.gmra.mxu0 %v449
      %v513 = vpop.f32.mrf.mxu0
      %v514 = vadd.f32 0.0, %v513
      %515 = vmatmul.f32.gmra.mxu0 %v452
      %v516 = vpop.f32.mrf.mxu0
      %v517 = vadd.f32 0.0, %v516
      %518 = vmatmul.f32.gmra.mxu0 %v455
      %v519 = vpop.f32.mrf.mxu0
      %v520 = vadd.f32 0.0, %v519
      %521 = vmatmul.f32.gmra.mxu0 %v458
      %v522 = vpop.f32.mrf.mxu0
      %v523 = vadd.f32 0.0, %v522
      %524 = vmatmul.f32.gmra.mxu0 %v461
      %v525 = vpop.f32.mrf.mxu0
      %v526 = vadd.f32 0.0, %v525
      %527 = vmatmul.f32.gmra.mxu0 %v464
      %v528 = vpop.f32.mrf.mxu0
      %v529 = vadd.f32 0.0, %v528
      %530 = vmatmul.f32.gmra.mxu0 %v467
      %v531 = vpop.f32.mrf.mxu0
      %v532 = vadd.f32 0.0, %v531
      %533 = vmatmul.f32.gmra.mxu0 %v470
      %v534 = vpop.f32.mrf.mxu0
      %v535 = vadd.f32 0.0, %v534
      %536 = vmatmul.f32.gmra.mxu0 %v473
      %v537 = vpop.f32.mrf.mxu0
      %v538 = vadd.f32 0.0, %v537
      %539 = vmatmul.f32.gmra.mxu0 %v476
      %v540 = vpop.f32.mrf.mxu0
      %v541 = vadd.f32 0.0, %v540
      %542 = vmatmul.f32.gmra.mxu0 %v479
      %v543 = vpop.f32.mrf.mxu0
      %v544 = vadd.f32 0.0, %v543
      %545 = vdwg.mxu0
      %v546 = vmul.f32 %v499, %v499
      %v547 = vmul.f32 %v502, %v502
      %v548 = vmul.f32 %v505, %v505
      %v549 = vmul.f32 %v508, %v508
      %v550 = vmul.f32 %v511, %v511
      %v551 = vmul.f32 %v514, %v514
      %v552 = vmul.f32 %v517, %v517
      %v553 = vmul.f32 %v520, %v520
      %v554 = vmul.f32 %v523, %v523
      %v555 = vmul.f32 %v526, %v526
      %v556 = vmul.f32 %v529, %v529
      %v557 = vmul.f32 %v532, %v532
      %v558 = vmul.f32 %v535, %v535
      %v559 = vmul.f32 %v538, %v538
      %v560 = vmul.f32 %v541, %v541
      %v561 = vmul.f32 %v544, %v544
      %vm562 = vcmask 64512
      %v563 = vsel %vm562, %v546, 0.0
      %564 = vadd.xlane.f32.xlu0 %v563
      %v565 = vpop.xlane.xlu0 %564
      %v566 = vsel %vm562, %v547, 0.0
      %567 = vadd.xlane.f32.xlu0 %v566
      %v568 = vpop.xlane.xlu0 %567
      %v569 = vsel %vm562, %v548, 0.0
      %570 = vadd.xlane.f32.xlu0 %v569
      %v571 = vpop.xlane.xlu0 %570
      %v572 = vsel %vm562, %v549, 0.0
      %573 = vadd.xlane.f32.xlu0 %v572
      %v574 = vpop.xlane.xlu0 %573
      %v575 = vsel %vm562, %v550, 0.0
      %576 = vadd.xlane.f32.xlu0 %v575
      %v577 = vpop.xlane.xlu0 %576
      %v578 = vsel %vm562, %v551, 0.0
      %579 = vadd.xlane.f32.xlu0 %v578
      %v580 = vpop.xlane.xlu0 %579
      %v581 = vsel %vm562, %v552, 0.0
      %582 = vadd.xlane.f32.xlu0 %v581
      %v583 = vpop.xlane.xlu0 %582
      %v584 = vsel %vm562, %v553, 0.0
      %585 = vadd.xlane.f32.xlu0 %v584
      %v586 = vpop.xlane.xlu0 %585
      %v587 = vsel %vm562, %v554, 0.0
      %588 = vadd.xlane.f32.xlu0 %v587
      %v589 = vpop.xlane.xlu0 %588
      %v590 = vsel %vm562, %v555, 0.0
      %591 = vadd.xlane.f32.xlu0 %v590
      %v592 = vpop.xlane.xlu0 %591
      %v593 = vsel %vm562, %v556, 0.0
      %594 = vadd.xlane.f32.xlu0 %v593
      %v595 = vpop.xlane.xlu0 %594
      %v596 = vsel %vm562, %v557, 0.0
      %597 = vadd.xlane.f32.xlu0 %v596
      %v598 = vpop.xlane.xlu0 %597
      %v599 = vsel %vm562, %v558, 0.0
      %600 = vadd.xlane.f32.xlu0 %v599
      %v601 = vpop.xlane.xlu0 %600
      %v602 = vsel %vm562, %v559, 0.0
      %603 = vadd.xlane.f32.xlu0 %v602
      %v604 = vpop.xlane.xlu0 %603
      %v605 = vsel %vm562, %v560, 0.0
      %606 = vadd.xlane.f32.xlu0 %v605
      %v607 = vpop.xlane.xlu0 %606
      %v608 = vsel %vm562, %v561, 0.0
      %609 = vadd.xlane.f32.xlu0 %v608
      %v610 = vpop.xlane.xlu0 %609
      %v611 = vrsqrt.pop %v565
      %v612 = vmul.f32 %v611, %v565
      %v613 = vmul.f32 %v612, %v611
      %v614 = vmul.f32 0.5, %v613
      %v615 = vsub.f32 1.5, %v614
      %v616 = vmul.f32 %v611, %v615
      %v617 = vmul.f32 %v565, %v616
      %vm618 = vcmp.eq.f32.partialorder %v565, inf
      %v619 = vsel %vm618, %v565, %v617
      %vm620 = vcmp.eq.f32.partialorder %v565, 0.0
      %v621 = vand.u32 %v565, 2147483648
      %v622 = vsel %vm620, %v621, %v619
      %v623 = vrsqrt.pop %v568
      %v624 = vmul.f32 %v623, %v568
      %v625 = vmul.f32 %v624, %v623
      %v626 = vmul.f32 0.5, %v625
      %v627 = vsub.f32 1.5, %v626
      %v628 = vmul.f32 %v623, %v627
      %v629 = vmul.f32 %v568, %v628
      %vm630 = vcmp.eq.f32.partialorder %v568, inf
      %v631 = vsel %vm630, %v568, %v629
      %vm632 = vcmp.eq.f32.partialorder %v568, 0.0
      %v633 = vand.u32 %v568, 2147483648
      %v634 = vsel %vm632, %v633, %v631
      %v635 = vrsqrt.pop %v571
      %v636 = vmul.f32 %v635, %v571
      %v637 = vmul.f32 %v636, %v635
      %v638 = vmul.f32 0.5, %v637
      %v639 = vsub.f32 1.5, %v638
      %v640 = vmul.f32 %v635, %v639
      %v641 = vmul.f32 %v571, %v640
      %vm642 = vcmp.eq.f32.partialorder %v571, inf
      %v643 = vsel %vm642, %v571, %v641
      %vm644 = vcmp.eq.f32.partialorder %v571, 0.0
      %v645 = vand.u32 %v571, 2147483648
      %v646 = vsel %vm644, %v645, %v643
      %v647 = vrsqrt.pop %v574
      %v648 = vmul.f32 %v647, %v574
      %v649 = vmul.f32 %v648, %v647
      %v650 = vmul.f32 0.5, %v649
      %v651 = vsub.f32 1.5, %v650
      %v652 = vmul.f32 %v647, %v651
      %v653 = vmul.f32 %v574, %v652
      %vm654 = vcmp.eq.f32.partialorder %v574, inf
      %v655 = vsel %vm654, %v574, %v653
      %vm656 = vcmp.eq.f32.partialorder %v574, 0.0
      %v657 = vand.u32 %v574, 2147483648
      %v658 = vsel %vm656, %v657, %v655
      %v659 = vrsqrt.pop %v577
      %v660 = vmul.f32 %v659, %v577
      %v661 = vmul.f32 %v660, %v659
      %v662 = vmul.f32 0.5, %v661
      %v663 = vsub.f32 1.5, %v662
      %v664 = vmul.f32 %v659, %v663
      %v665 = vmul.f32 %v577, %v664
      %vm666 = vcmp.eq.f32.partialorder %v577, inf
      %v667 = vsel %vm666, %v577, %v665
      %vm668 = vcmp.eq.f32.partialorder %v577, 0.0
      %v669 = vand.u32 %v577, 2147483648
      %v670 = vsel %vm668, %v669, %v667
      %v671 = vrsqrt.pop %v580
      %v672 = vmul.f32 %v671, %v580
      %v673 = vmul.f32 %v672, %v671
      %v674 = vmul.f32 0.5, %v673
      %v675 = vsub.f32 1.5, %v674
      %v676 = vmul.f32 %v671, %v675
      %v677 = vmul.f32 %v580, %v676
      %vm678 = vcmp.eq.f32.partialorder %v580, inf
      %v679 = vsel %vm678, %v580, %v677
      %vm680 = vcmp.eq.f32.partialorder %v580, 0.0
      %v681 = vand.u32 %v580, 2147483648
      %v682 = vsel %vm680, %v681, %v679
      %v683 = vrsqrt.pop %v583
      %v684 = vmul.f32 %v683, %v583
      %v685 = vmul.f32 %v684, %v683
      %v686 = vmul.f32 0.5, %v685
      %v687 = vsub.f32 1.5, %v686
      %v688 = vmul.f32 %v683, %v687
      %v689 = vmul.f32 %v583, %v688
      %vm690 = vcmp.eq.f32.partialorder %v583, inf
      %v691 = vsel %vm690, %v583, %v689
      %vm692 = vcmp.eq.f32.partialorder %v583, 0.0
      %v693 = vand.u32 %v583, 2147483648
      %v694 = vsel %vm692, %v693, %v691
      %v695 = vrsqrt.pop %v586
      %v696 = vmul.f32 %v695, %v586
      %v697 = vmul.f32 %v696, %v695
      %v698 = vmul.f32 0.5, %v697
      %v699 = vsub.f32 1.5, %v698
      %v700 = vmul.f32 %v695, %v699
      %v701 = vmul.f32 %v586, %v700
      %vm702 = vcmp.eq.f32.partialorder %v586, inf
      %v703 = vsel %vm702, %v586, %v701
      %vm704 = vcmp.eq.f32.partialorder %v586, 0.0
      %v705 = vand.u32 %v586, 2147483648
      %v706 = vsel %vm704, %v705, %v703
      %v707 = vrsqrt.pop %v589
      %v708 = vmul.f32 %v707, %v589
      %v709 = vmul.f32 %v708, %v707
      %v710 = vmul.f32 0.5, %v709
      %v711 = vsub.f32 1.5, %v710
      %v712 = vmul.f32 %v707, %v711
      %v713 = vmul.f32 %v589, %v712
      %vm714 = vcmp.eq.f32.partialorder %v589, inf
      %v715 = vsel %vm714, %v589, %v713
      %vm716 = vcmp.eq.f32.partialorder %v589, 0.0
      %v717 = vand.u32 %v589, 2147483648
      %v718 = vsel %vm716, %v717, %v715
      %v719 = vrsqrt.pop %v592
      %v720 = vmul.f32 %v719, %v592
      %v721 = vmul.f32 %v720, %v719
      %v722 = vmul.f32 0.5, %v721
      %v723 = vsub.f32 1.5, %v722
      %v724 = vmul.f32 %v719, %v723
      %v725 = vmul.f32 %v592, %v724
      %vm726 = vcmp.eq.f32.partialorder %v592, inf
      %v727 = vsel %vm726, %v592, %v725
      %vm728 = vcmp.eq.f32.partialorder %v592, 0.0
      %v729 = vand.u32 %v592, 2147483648
      %v730 = vsel %vm728, %v729, %v727
      %v731 = vrsqrt.pop %v595
      %v732 = vmul.f32 %v731, %v595
      %v733 = vmul.f32 %v732, %v731
      %v734 = vmul.f32 0.5, %v733
      %v735 = vsub.f32 1.5, %v734
      %v736 = vmul.f32 %v731, %v735
      %v737 = vmul.f32 %v595, %v736
      %vm738 = vcmp.eq.f32.partialorder %v595, inf
      %v739 = vsel %vm738, %v595, %v737
      %vm740 = vcmp.eq.f32.partialorder %v595, 0.0
      %v741 = vand.u32 %v595, 2147483648
      %v742 = vsel %vm740, %v741, %v739
      %v743 = vrsqrt.pop %v598
      %v744 = vmul.f32 %v743, %v598
      %v745 = vmul.f32 %v744, %v743
      %v746 = vmul.f32 0.5, %v745
      %v747 = vsub.f32 1.5, %v746
      %v748 = vmul.f32 %v743, %v747
      %v749 = vmul.f32 %v598, %v748
      %vm750 = vcmp.eq.f32.partialorder %v598, inf
      %v751 = vsel %vm750, %v598, %v749
      %vm752 = vcmp.eq.f32.partialorder %v598, 0.0
      %v753 = vand.u32 %v598, 2147483648
      %v754 = vsel %vm752, %v753, %v751
      %v755 = vrsqrt.pop %v601
      %v756 = vmul.f32 %v755, %v601
      %v757 = vmul.f32 %v756, %v755
      %v758 = vmul.f32 0.5, %v757
      %v759 = vsub.f32 1.5, %v758
      %v760 = vmul.f32 %v755, %v759
      %v761 = vmul.f32 %v601, %v760
      %vm762 = vcmp.eq.f32.partialorder %v601, inf
      %v763 = vsel %vm762, %v601, %v761
      %vm764 = vcmp.eq.f32.partialorder %v601, 0.0
      %v765 = vand.u32 %v601, 2147483648
      %v766 = vsel %vm764, %v765, %v763
      %v767 = vrsqrt.pop %v604
      %v768 = vmul.f32 %v767, %v604
      %v769 = vmul.f32 %v768, %v767
      %v770 = vmul.f32 0.5, %v769
      %v771 = vsub.f32 1.5, %v770
      %v772 = vmul.f32 %v767, %v771
      %v773 = vmul.f32 %v604, %v772
      %vm774 = vcmp.eq.f32.partialorder %v604, inf
      %v775 = vsel %vm774, %v604, %v773
      %vm776 = vcmp.eq.f32.partialorder %v604, 0.0
      %v777 = vand.u32 %v604, 2147483648
      %v778 = vsel %vm776, %v777, %v775
      %v779 = vrsqrt.pop %v607
      %v780 = vmul.f32 %v779, %v607
      %v781 = vmul.f32 %v780, %v779
      %v782 = vmul.f32 0.5, %v781
      %v783 = vsub.f32 1.5, %v782
      %v784 = vmul.f32 %v779, %v783
      %v785 = vmul.f32 %v607, %v784
      %vm786 = vcmp.eq.f32.partialorder %v607, inf
      %v787 = vsel %vm786, %v607, %v785
      %vm788 = vcmp.eq.f32.partialorder %v607, 0.0
      %v789 = vand.u32 %v607, 2147483648
      %v790 = vsel %vm788, %v789, %v787
      %v791 = vrsqrt.pop %v610
      %v792 = vmul.f32 %v791, %v610
      %v793 = vmul.f32 %v792, %v791
      %v794 = vmul.f32 0.5, %v793
      %v795 = vsub.f32 1.5, %v794
      %v796 = vmul.f32 %v791, %v795
      %v797 = vmul.f32 %v610, %v796
      %vm798 = vcmp.eq.f32.partialorder %v610, inf
      %v799 = vsel %vm798, %v610, %v797
      %vm800 = vcmp.eq.f32.partialorder %v610, 0.0
      %v801 = vand.u32 %v610, 2147483648
      %v802 = vsel %vm800, %v801, %v799
      %v803 = vadd.f32 %v622, 1e-08
      %v804 = vadd.f32 %v634, 1e-08
      %v805 = vadd.f32 %v646, 1e-08
      %v806 = vadd.f32 %v658, 1e-08
      %v807 = vadd.f32 %v670, 1e-08
      %v808 = vadd.f32 %v682, 1e-08
      %v809 = vadd.f32 %v694, 1e-08
      %v810 = vadd.f32 %v706, 1e-08
      %v811 = vadd.f32 %v718, 1e-08
      %v812 = vadd.f32 %v730, 1e-08
      %v813 = vadd.f32 %v742, 1e-08
      %v814 = vadd.f32 %v754, 1e-08
      %v815 = vadd.f32 %v766, 1e-08
      %v816 = vadd.f32 %v778, 1e-08
      %v817 = vadd.f32 %v790, 1e-08
      %v818 = vadd.f32 %v802, 1e-08
      %v819 = vrcp.pop %v803
      %v820 = vmul.f32 %v803, %v819
      %v821 = vsub.f32 1.0, %v820
      %v822 = vmul.f32 %v819, %v821
      %v823 = vadd.f32 %v819, %v822
      %vm824 = vweird.f32 %v803
      %vm825 = vweird.f32 %v819
      %vm826 = vmor %vm824, %vm825
      %v827 = vsel %vm826, %v819, %v823
      %v828 = vand.u32 2147483647, %v803
      %vm829 = vcmp.eq.f32.partialorder %v828, 8.507059e+37
      %v830 = vand.u32 %v803, 2147483648
      %v831 = vor.u32 1.1754944e-38, %v830
      %v832 = vsel %vm829, %v831, %v827
      %v833 = vmul.f32 1.0, %v832
      %v834 = vrcp.pop %v804
      %v835 = vmul.f32 %v804, %v834
      %v836 = vsub.f32 1.0, %v835
      %v837 = vmul.f32 %v834, %v836
      %v838 = vadd.f32 %v834, %v837
      %vm839 = vweird.f32 %v804
      %vm840 = vweird.f32 %v834
      %vm841 = vmor %vm839, %vm840
      %v842 = vsel %vm841, %v834, %v838
      %v843 = vand.u32 2147483647, %v804
      %vm844 = vcmp.eq.f32.partialorder %v843, 8.507059e+37
      %v845 = vand.u32 %v804, 2147483648
      %v846 = vor.u32 1.1754944e-38, %v845
      %v847 = vsel %vm844, %v846, %v842
      %v848 = vmul.f32 1.0, %v847
      %v849 = vrcp.pop %v805
      %v850 = vmul.f32 %v805, %v849
      %v851 = vsub.f32 1.0, %v850
      %v852 = vmul.f32 %v849, %v851
      %v853 = vadd.f32 %v849, %v852
      %vm854 = vweird.f32 %v805
      %vm855 = vweird.f32 %v849
      %vm856 = vmor %vm854, %vm855
      %v857 = vsel %vm856, %v849, %v853
      %v858 = vand.u32 2147483647, %v805
      %vm859 = vcmp.eq.f32.partialorder %v858, 8.507059e+37
      %v860 = vand.u32 %v805, 2147483648
      %v861 = vor.u32 1.1754944e-38, %v860
      %v862 = vsel %vm859, %v861, %v857
      %v863 = vmul.f32 1.0, %v862
      %v864 = vrcp.pop %v806
      %v865 = vmul.f32 %v806, %v864
      %v866 = vsub.f32 1.0, %v865
      %v867 = vmul.f32 %v864, %v866
      %v868 = vadd.f32 %v864, %v867
      %vm869 = vweird.f32 %v806
      %vm870 = vweird.f32 %v864
      %vm871 = vmor %vm869, %vm870
      %v872 = vsel %vm871, %v864, %v868
      %v873 = vand.u32 2147483647, %v806
      %vm874 = vcmp.eq.f32.partialorder %v873, 8.507059e+37
      %v875 = vand.u32 %v806, 2147483648
      %v876 = vor.u32 1.1754944e-38, %v875
      %v877 = vsel %vm874, %v876, %v872
      %v878 = vmul.f32 1.0, %v877
      %v879 = vrcp.pop %v807
      %v880 = vmul.f32 %v807, %v879
      %v881 = vsub.f32 1.0, %v880
      %v882 = vmul.f32 %v879, %v881
      %v883 = vadd.f32 %v879, %v882
      %vm884 = vweird.f32 %v807
      %vm885 = vweird.f32 %v879
      %vm886 = vmor %vm884, %vm885
      %v887 = vsel %vm886, %v879, %v883
      %v888 = vand.u32 2147483647, %v807
      %vm889 = vcmp.eq.f32.partialorder %v888, 8.507059e+37
      %v890 = vand.u32 %v807, 2147483648
      %v891 = vor.u32 1.1754944e-38, %v890
      %v892 = vsel %vm889, %v891, %v887
      %v893 = vmul.f32 1.0, %v892
      %v894 = vrcp.pop %v808
      %v895 = vmul.f32 %v808, %v894
      %v896 = vsub.f32 1.0, %v895
      %v897 = vmul.f32 %v894, %v896
      %v898 = vadd.f32 %v894, %v897
      %vm899 = vweird.f32 %v808
      %vm900 = vweird.f32 %v894
      %vm901 = vmor %vm899, %vm900
      %v902 = vsel %vm901, %v894, %v898
      %v903 = vand.u32 2147483647, %v808
      %vm904 = vcmp.eq.f32.partialorder %v903, 8.507059e+37
      %v905 = vand.u32 %v808, 2147483648
      %v906 = vor.u32 1.1754944e-38, %v905
      %v907 = vsel %vm904, %v906, %v902
      %v908 = vmul.f32 1.0, %v907
      %v909 = vrcp.pop %v809
      %v910 = vmul.f32 %v809, %v909
      %v911 = vsub.f32 1.0, %v910
      %v912 = vmul.f32 %v909, %v911
      %v913 = vadd.f32 %v909, %v912
      %vm914 = vweird.f32 %v809
      %vm915 = vweird.f32 %v909
      %vm916 = vmor %vm914, %vm915
      %v917 = vsel %vm916, %v909, %v913
      %v918 = vand.u32 2147483647, %v809
      %vm919 = vcmp.eq.f32.partialorder %v918, 8.507059e+37
      %v920 = vand.u32 %v809, 2147483648
      %v921 = vor.u32 1.1754944e-38, %v920
      %v922 = vsel %vm919, %v921, %v917
      %v923 = vmul.f32 1.0, %v922
      %v924 = vrcp.pop %v810
      %v925 = vmul.f32 %v810, %v924
      %v926 = vsub.f32 1.0, %v925
      %v927 = vmul.f32 %v924, %v926
      %v928 = vadd.f32 %v924, %v927
      %vm929 = vweird.f32 %v810
      %vm930 = vweird.f32 %v924
      %vm931 = vmor %vm929, %vm930
      %v932 = vsel %vm931, %v924, %v928
      %v933 = vand.u32 2147483647, %v810
      %vm934 = vcmp.eq.f32.partialorder %v933, 8.507059e+37
      %v935 = vand.u32 %v810, 2147483648
      %v936 = vor.u32 1.1754944e-38, %v935
      %v937 = vsel %vm934, %v936, %v932
      %v938 = vmul.f32 1.0, %v937
      %v939 = vrcp.pop %v811
      %v940 = vmul.f32 %v811, %v939
      %v941 = vsub.f32 1.0, %v940
      %v942 = vmul.f32 %v939, %v941
      %v943 = vadd.f32 %v939, %v942
      %vm944 = vweird.f32 %v811
      %vm945 = vweird.f32 %v939
      %vm946 = vmor %vm944, %vm945
      %v947 = vsel %vm946, %v939, %v943
      %v948 = vand.u32 2147483647, %v811
      %vm949 = vcmp.eq.f32.partialorder %v948, 8.507059e+37
      %v950 = vand.u32 %v811, 2147483648
      %v951 = vor.u32 1.1754944e-38, %v950
      %v952 = vsel %vm949, %v951, %v947
      %v953 = vmul.f32 1.0, %v952
      %v954 = vrcp.pop %v812
      %v955 = vmul.f32 %v812, %v954
      %v956 = vsub.f32 1.0, %v955
      %v957 = vmul.f32 %v954, %v956
      %v958 = vadd.f32 %v954, %v957
      %vm959 = vweird.f32 %v812
      %vm960 = vweird.f32 %v954
      %vm961 = vmor %vm959, %vm960
      %v962 = vsel %vm961, %v954, %v958
      %v963 = vand.u32 2147483647, %v812
      %vm964 = vcmp.eq.f32.partialorder %v963, 8.507059e+37
      %v965 = vand.u32 %v812, 2147483648
      %v966 = vor.u32 1.1754944e-38, %v965
      %v967 = vsel %vm964, %v966, %v962
      %v968 = vmul.f32 1.0, %v967
      %v969 = vrcp.pop %v813
      %v970 = vmul.f32 %v813, %v969
      %v971 = vsub.f32 1.0, %v970
      %v972 = vmul.f32 %v969, %v971
      %v973 = vadd.f32 %v969, %v972
      %vm974 = vweird.f32 %v813
      %vm975 = vweird.f32 %v969
      %vm976 = vmor %vm974, %vm975
      %v977 = vsel %vm976, %v969, %v973
      %v978 = vand.u32 2147483647, %v813
      %vm979 = vcmp.eq.f32.partialorder %v978, 8.507059e+37
      %v980 = vand.u32 %v813, 2147483648
      %v981 = vor.u32 1.1754944e-38, %v980
      %v982 = vsel %vm979, %v981, %v977
      %v983 = vmul.f32 1.0, %v982
      %v984 = vrcp.pop %v814
      %v985 = vmul.f32 %v814, %v984
      %v986 = vsub.f32 1.0, %v985
      %v987 = vmul.f32 %v984, %v986
      %v988 = vadd.f32 %v984, %v987
      %vm989 = vweird.f32 %v814
      %vm990 = vweird.f32 %v984
      %vm991 = vmor %vm989, %vm990
      %v992 = vsel %vm991, %v984, %v988
      %v993 = vand.u32 2147483647, %v814
      %vm994 = vcmp.eq.f32.partialorder %v993, 8.507059e+37
      %v995 = vand.u32 %v814, 2147483648
      %v996 = vor.u32 1.1754944e-38, %v995
      %v997 = vsel %vm994, %v996, %v992
      %v998 = vmul.f32 1.0, %v997
      %v999 = vrcp.pop %v815
      %v1000 = vmul.f32 %v815, %v999
      %v1001 = vsub.f32 1.0, %v1000
      %v1002 = vmul.f32 %v999, %v1001
      %v1003 = vadd.f32 %v999, %v1002
      %vm1004 = vweird.f32 %v815
      %vm1005 = vweird.f32 %v999
      %vm1006 = vmor %vm1004, %vm1005
      %v1007 = vsel %vm1006, %v999, %v1003
      %v1008 = vand.u32 2147483647, %v815
      %vm1009 = vcmp.eq.f32.partialorder %v1008, 8.507059e+37
      %v1010 = vand.u32 %v815, 2147483648
      %v1011 = vor.u32 1.1754944e-38, %v1010
      %v1012 = vsel %vm1009, %v1011, %v1007
      %v1013 = vmul.f32 1.0, %v1012
      %v1014 = vrcp.pop %v816
      %v1015 = vmul.f32 %v816, %v1014
      %v1016 = vsub.f32 1.0, %v1015
      %v1017 = vmul.f32 %v1014, %v1016
      %v1018 = vadd.f32 %v1014, %v1017
      %vm1019 = vweird.f32 %v816
      %vm1020 = vweird.f32 %v1014
      %vm1021 = vmor %vm1019, %vm1020
      %v1022 = vsel %vm1021, %v1014, %v1018
      %v1023 = vand.u32 2147483647, %v816
      %vm1024 = vcmp.eq.f32.partialorder %v1023, 8.507059e+37
      %v1025 = vand.u32 %v816, 2147483648
      %v1026 = vor.u32 1.1754944e-38, %v1025
      %v1027 = vsel %vm1024, %v1026, %v1022
      %v1028 = vmul.f32 1.0, %v1027
      %v1029 = vrcp.pop %v817
      %v1030 = vmul.f32 %v817, %v1029
      %v1031 = vsub.f32 1.0, %v1030
      %v1032 = vmul.f32 %v1029, %v1031
      %v1033 = vadd.f32 %v1029, %v1032
      %vm1034 = vweird.f32 %v817
      %vm1035 = vweird.f32 %v1029
      %vm1036 = vmor %vm1034, %vm1035
      %v1037 = vsel %vm1036, %v1029, %v1033
      %v1038 = vand.u32 2147483647, %v817
      %vm1039 = vcmp.eq.f32.partialorder %v1038, 8.507059e+37
      %v1040 = vand.u32 %v817, 2147483648
      %v1041 = vor.u32 1.1754944e-38, %v1040
      %v1042 = vsel %vm1039, %v1041, %v1037
      %v1043 = vmul.f32 1.0, %v1042
      %v1044 = vrcp.pop %v818
      %v1045 = vmul.f32 %v818, %v1044
      %v1046 = vsub.f32 1.0, %v1045
      %v1047 = vmul.f32 %v1044, %v1046
      %v1048 = vadd.f32 %v1044, %v1047
      %vm1049 = vweird.f32 %v818
      %vm1050 = vweird.f32 %v1044
      %vm1051 = vmor %vm1049, %vm1050
      %v1052 = vsel %vm1051, %v1044, %v1048
      %v1053 = vand.u32 2147483647, %v818
      %vm1054 = vcmp.eq.f32.partialorder %v1053, 8.507059e+37
      %v1055 = vand.u32 %v818, 2147483648
      %v1056 = vor.u32 1.1754944e-38, %v1055
      %v1057 = vsel %vm1054, %v1056, %v1052
      %v1058 = vmul.f32 1.0, %v1057
      %v1059 = vmul.f32 %v499, %v833
      %v1060 = vmul.f32 %v502, %v848
      %v1061 = vmul.f32 %v505, %v863
      %v1062 = vmul.f32 %v508, %v878
      %v1063 = vmul.f32 %v511, %v893
      %v1064 = vmul.f32 %v514, %v908
      %v1065 = vmul.f32 %v517, %v923
      %v1066 = vmul.f32 %v520, %v938
      %v1067 = vmul.f32 %v523, %v953
      %v1068 = vmul.f32 %v526, %v968
      %v1069 = vmul.f32 %v529, %v983
      %v1070 = vmul.f32 %v532, %v998
      %v1071 = vmul.f32 %v535, %v1013
      %v1072 = vmul.f32 %v538, %v1028
      %v1073 = vmul.f32 %v541, %v1043
      %v1074 = vmul.f32 %v544, %v1058
      %v1075 = vld [vmem:[%s394] sm:$0xff]
      %v1076 = vld [vmem:[%s394 + $0x8] sm:$0xff]
      %v1077 = vld [vmem:[%s394 + $0x10] sm:$0xff]
      %v1078 = vld [vmem:[%s394 + $0x18] sm:$0xff]
      %v1079 = vld [vmem:[%s394 + $0x20] sm:$0xff]
      %v1080 = vld [vmem:[%s394 + $0x28] sm:$0xff]
      %v1081 = vld [vmem:[%s394 + $0x30] sm:$0xff]
      %v1082 = vld [vmem:[%s394 + $0x38] sm:$0xff]
      %v1083 = vld [vmem:[%s394 + $0x40] sm:$0xff]
      %v1084 = vld [vmem:[%s394 + $0x48] sm:$0xff]
      %v1085 = vld [vmem:[%s394 + $0x50] sm:$0xff]
      %v1086 = vld [vmem:[%s394 + $0x58] sm:$0xff]
      %v1087 = vld [vmem:[%s394 + $0x60] sm:$0xff]
      %v1088 = vld [vmem:[%s394 + $0x68] sm:$0xff]
      %v1089 = vld [vmem:[%s394 + $0x70] sm:$0xff]
      %v1090 = vld [vmem:[%s394 + $0x78] sm:$0xff]
      %v1091 = vadd.f32 %v1059, %v1075
      %v1092 = vadd.f32 %v1060, %v1076
      %v1093 = vadd.f32 %v1061, %v1077
      %v1094 = vadd.f32 %v1062, %v1078
      %v1095 = vadd.f32 %v1063, %v1079
      %v1096 = vadd.f32 %v1064, %v1080
      %v1097 = vadd.f32 %v1065, %v1081
      %v1098 = vadd.f32 %v1066, %v1082
      %v1099 = vadd.f32 %v1067, %v1083
      %v1100 = vadd.f32 %v1068, %v1084
      %v1101 = vadd.f32 %v1069, %v1085
      %v1102 = vadd.f32 %v1070, %v1086
      %v1103 = vadd.f32 %v1071, %v1087
      %v1104 = vadd.f32 %v1072, %v1088
      %v1105 = vadd.f32 %v1073, %v1089
      %v1106 = vadd.f32 %v1074, %v1090
      %1107 = vst.msk [vmem:[%s400] sm:$0xff] %vm562, %v1091
      %1108 = vst.msk [vmem:[%s400 + $0x8] sm:$0xff] %vm562, %v1092
      %1109 = vst.msk [vmem:[%s400 + $0x10] sm:$0xff] %vm562, %v1093
      %1110 = vst.msk [vmem:[%s400 + $0x18] sm:$0xff] %vm562, %v1094
      %1111 = vst.msk [vmem:[%s400 + $0x20] sm:$0xff] %vm562, %v1095
      %1112 = vst.msk [vmem:[%s400 + $0x28] sm:$0xff] %vm562, %v1096
      %1113 = vst.msk [vmem:[%s400 + $0x30] sm:$0xff] %vm562, %v1097
      %1114 = vst.msk [vmem:[%s400 + $0x38] sm:$0xff] %vm562, %v1098
      %1115 = vst.msk [vmem:[%s400 + $0x40] sm:$0xff] %vm562, %v1099
      %1116 = vst.msk [vmem:[%s400 + $0x48] sm:$0xff] %vm562, %v1100
      %1117 = vst.msk [vmem:[%s400 + $0x50] sm:$0xff] %vm562, %v1101
      %1118 = vst.msk [vmem:[%s400 + $0x58] sm:$0xff] %vm562, %v1102
      %1119 = vst.msk [vmem:[%s400 + $0x60] sm:$0xff] %vm562, %v1103
      %1120 = vst.msk [vmem:[%s400 + $0x68] sm:$0xff] %vm562, %v1104
      %1121 = vst.msk [vmem:[%s400 + $0x70] sm:$0xff] %vm562, %v1105
      %1122 = vst.msk [vmem:[%s400 + $0x78] sm:$0xff] %vm562, %v1106
      %v1123 = vmul.f32 %v1091, %v1091
      %v1124 = vmul.f32 %v1092, %v1092
      %v1125 = vmul.f32 %v1093, %v1093
      %v1126 = vmul.f32 %v1094, %v1094
      %v1127 = vmul.f32 %v1095, %v1095
      %v1128 = vmul.f32 %v1096, %v1096
      %v1129 = vmul.f32 %v1097, %v1097
      %v1130 = vmul.f32 %v1098, %v1098
      %v1131 = vmul.f32 %v1099, %v1099
      %v1132 = vmul.f32 %v1100, %v1100
      %v1133 = vmul.f32 %v1101, %v1101
      %v1134 = vmul.f32 %v1102, %v1102
      %v1135 = vmul.f32 %v1103, %v1103
      %v1136 = vmul.f32 %v1104, %v1104
      %v1137 = vmul.f32 %v1105, %v1105
      %v1138 = vmul.f32 %v1106, %v1106
      %v1139 = vsel %vm562, %v1123, 0.0
      %1140 = vadd.xlane.f32.xlu0 %v1139
      %v1141 = vpop.xlane.xlu0 %1140
      %v1142 = vsel %vm562, %v1124, 0.0
      %1143 = vadd.xlane.f32.xlu0 %v1142
      %v1144 = vpop.xlane.xlu0 %1143
      %v1145 = vsel %vm562, %v1125, 0.0
      %1146 = vadd.xlane.f32.xlu0 %v1145
      %v1147 = vpop.xlane.xlu0 %1146
      %v1148 = vsel %vm562, %v1126, 0.0
      %1149 = vadd.xlane.f32.xlu0 %v1148
      %v1150 = vpop.xlane.xlu0 %1149
      %v1151 = vsel %vm562, %v1127, 0.0
      %1152 = vadd.xlane.f32.xlu0 %v1151
      %v1153 = vpop.xlane.xlu0 %1152
      %v1154 = vsel %vm562, %v1128, 0.0
      %1155 = vadd.xlane.f32.xlu0 %v1154
      %v1156 = vpop.xlane.xlu0 %1155
      %v1157 = vsel %vm562, %v1129, 0.0
      %1158 = vadd.xlane.f32.xlu0 %v1157
      %v1159 = vpop.xlane.xlu0 %1158
      %v1160 = vsel %vm562, %v1130, 0.0
      %1161 = vadd.xlane.f32.xlu0 %v1160
      %v1162 = vpop.xlane.xlu0 %1161
      %v1163 = vsel %vm562, %v1131, 0.0
      %1164 = vadd.xlane.f32.xlu0 %v1163
      %v1165 = vpop.xlane.xlu0 %1164
      %v1166 = vsel %vm562, %v1132, 0.0
      %1167 = vadd.xlane.f32.xlu0 %v1166
      %v1168 = vpop.xlane.xlu0 %1167
      %v1169 = vsel %vm562, %v1133, 0.0
      %1170 = vadd.xlane.f32.xlu0 %v1169
      %v1171 = vpop.xlane.xlu0 %1170
      %v1172 = vsel %vm562, %v1134, 0.0
      %1173 = vadd.xlane.f32.xlu0 %v1172
      %v1174 = vpop.xlane.xlu0 %1173
      %v1175 = vsel %vm562, %v1135, 0.0
      %1176 = vadd.xlane.f32.xlu0 %v1175
      %v1177 = vpop.xlane.xlu0 %1176
      %v1178 = vsel %vm562, %v1136, 0.0
      %1179 = vadd.xlane.f32.xlu0 %v1178
      %v1180 = vpop.xlane.xlu0 %1179
      %v1181 = vsel %vm562, %v1137, 0.0
      %1182 = vadd.xlane.f32.xlu0 %v1181
      %v1183 = vpop.xlane.xlu0 %1182
      %v1184 = vsel %vm562, %v1138, 0.0
      %1185 = vadd.xlane.f32.xlu0 %v1184
      %v1186 = vpop.xlane.xlu0 %1185
      %vm1187 = vcmask 7168
      %1188 = vst.msk [vmem:[%s412] sm:$0xff] %vm1187, %v1141
      %1189 = vst.msk [vmem:[%s412 + $0x8] sm:$0xff] %vm1187, %v1144
      %1190 = vst.msk [vmem:[%s412 + $0x10] sm:$0xff] %vm1187, %v1147
      %1191 = vst.msk [vmem:[%s412 + $0x18] sm:$0xff] %vm1187, %v1150
      %1192 = vst.msk [vmem:[%s412 + $0x20] sm:$0xff] %vm1187, %v1153
      %1193 = vst.msk [vmem:[%s412 + $0x28] sm:$0xff] %vm1187, %v1156
      %1194 = vst.msk [vmem:[%s412 + $0x30] sm:$0xff] %vm1187, %v1159
      %1195 = vst.msk [vmem:[%s412 + $0x38] sm:$0xff] %vm1187, %v1162
      %1196 = vst.msk [vmem:[%s412 + $0x40] sm:$0xff] %vm1187, %v1165
      %1197 = vst.msk [vmem:[%s412 + $0x48] sm:$0xff] %vm1187, %v1168
      %1198 = vst.msk [vmem:[%s412 + $0x50] sm:$0xff] %vm1187, %v1171
      %1199 = vst.msk [vmem:[%s412 + $0x58] sm:$0xff] %vm1187, %v1174
      %1200 = vst.msk [vmem:[%s412 + $0x60] sm:$0xff] %vm1187, %v1177
      %1201 = vst.msk [vmem:[%s412 + $0x68] sm:$0xff] %vm1187, %v1180
      %1202 = vst.msk [vmem:[%s412 + $0x70] sm:$0xff] %vm1187, %v1183
      %1203 = vst.msk [vmem:[%s412 + $0x78] sm:$0xff] %vm1187, %v1186
      %v1204 = vld [vmem:[%s3] sm:$0xff]
      %v1205 = vld [vmem:[%s4] sm:$0x1]
      %v1207 = vperm.slane %v1205, 0
      %v1210 = vsel %vm562, %v1091, 0
      %v1213 = vsel %vm562, %v1092, 0
      %v1216 = vsel %vm562, %v1093, 0
      %v1219 = vsel %vm562, %v1094, 0
      %v1222 = vsel %vm562, %v1095, 0
      %v1225 = vsel %vm562, %v1096, 0
      %v1228 = vsel %vm562, %v1097, 0
      %v1231 = vsel %vm562, %v1098, 0
      %v1234 = vsel %vm562, %v1099, 0
      %v1237 = vsel %vm562, %v1100, 0
      %v1240 = vsel %vm562, %v1101, 0
      %v1243 = vsel %vm562, %v1102, 0
      %v1246 = vsel %vm562, %v1103, 0
      %v1249 = vsel %vm562, %v1104, 0
      %v1252 = vsel %vm562, %v1105, 0
      %v1255 = vsel %vm562, %v1106, 0
      %1257 = vmatpush.msra.mxu0 0.0
      %1258 = vmatpush.msra.mxu0 0.0
      %1259 = vmatpush.msra.mxu0 0.0
      %1260 = vmatpush.msra.mxu0 0.0
      %1261 = vmatpush.msra.mxu0 0.0
      %1262 = vmatpush.msra.mxu0 0.0
      %1263 = vmatpush.msra.mxu0 0.0
      %1264 = vmatpush.msra.mxu0 0.0
      %1265 = vmatpush.msra.mxu0 0.0
      %1266 = vmatpush.msra.mxu0 0.0
      %1267 = vmatpush.msra.mxu0 0.0
      %1268 = vmatpush.msra.mxu0 0.0
      %1269 = vmatpush.msra.mxu0 0.0
      %1270 = vmatpush.msra.mxu0 0.0
      %1271 = vmatpush.msra.mxu0 0.0
      %1272 = vmatpush.msra.mxu0 %v1204
      %1273 = vmatmul.f32.gmra.mxu0 %v1210
      %v1274 = vpop.f32.mrf.mxu0
      %v1275 = vadd.f32 %v1207, %v1274
      %1276 = vmatmul.f32.gmra.mxu0 %v1213
      %v1277 = vpop.f32.mrf.mxu0
      %v1278 = vadd.f32 %v1207, %v1277
      %1279 = vmatmul.f32.gmra.mxu0 %v1216
      %v1280 = vpop.f32.mrf.mxu0
      %v1281 = vadd.f32 %v1207, %v1280
      %1282 = vmatmul.f32.gmra.mxu0 %v1219
      %v1283 = vpop.f32.mrf.mxu0
      %v1284 = vadd.f32 %v1207, %v1283
      %1285 = vmatmul.f32.gmra.mxu0 %v1222
      %v1286 = vpop.f32.mrf.mxu0
      %v1287 = vadd.f32 %v1207, %v1286
      %1288 = vmatmul.f32.gmra.mxu0 %v1225
      %v1289 = vpop.f32.mrf.mxu0
      %v1290 = vadd.f32 %v1207, %v1289
      %1291 = vmatmul.f32.gmra.mxu0 %v1228
      %v1292 = vpop.f32.mrf.mxu0
      %v1293 = vadd.f32 %v1207, %v1292
      %1294 = vmatmul.f32.gmra.mxu0 %v1231
      %v1295 = vpop.f32.mrf.mxu0
      %v1296 = vadd.f32 %v1207, %v1295
      %1297 = vmatmul.f32.gmra.mxu0 %v1234
      %v1298 = vpop.f32.mrf.mxu0
      %v1299 = vadd.f32 %v1207, %v1298
      %1300 = vmatmul.f32.gmra.mxu0 %v1237
      %v1301 = vpop.f32.mrf.mxu0
      %v1302 = vadd.f32 %v1207, %v1301
      %1303 = vmatmul.f32.gmra.mxu0 %v1240
      %v1304 = vpop.f32.mrf.mxu0
      %v1305 = vadd.f32 %v1207, %v1304
      %1306 = vmatmul.f32.gmra.mxu0 %v1243
      %v1307 = vpop.f32.mrf.mxu0
      %v1308 = vadd.f32 %v1207, %v1307
      %1309 = vmatmul.f32.gmra.mxu0 %v1246
      %v1310 = vpop.f32.mrf.mxu0
      %v1311 = vadd.f32 %v1207, %v1310
      %1312 = vmatmul.f32.gmra.mxu0 %v1249
      %v1313 = vpop.f32.mrf.mxu0
      %v1314 = vadd.f32 %v1207, %v1313
      %1315 = vmatmul.f32.gmra.mxu0 %v1252
      %v1316 = vpop.f32.mrf.mxu0
      %v1317 = vadd.f32 %v1207, %v1316
      %1318 = vmatmul.f32.gmra.mxu0 %v1255
      %v1319 = vpop.f32.mrf.mxu0
      %v1320 = vadd.f32 %v1207, %v1319
      %1321 = vdwg.mxu0
      %vm1322 = vcmp.gt.f32.partialorder %v1275, 0.0
      %vm1323 = vcmp.gt.f32.partialorder %v1278, 0.0
      %vm1324 = vcmp.gt.f32.partialorder %v1281, 0.0
      %vm1325 = vcmp.gt.f32.partialorder %v1284, 0.0
      %vm1326 = vcmp.gt.f32.partialorder %v1287, 0.0
      %vm1327 = vcmp.gt.f32.partialorder %v1290, 0.0
      %vm1328 = vcmp.gt.f32.partialorder %v1293, 0.0
      %vm1329 = vcmp.gt.f32.partialorder %v1296, 0.0
      %vm1330 = vcmp.gt.f32.partialorder %v1299, 0.0
      %vm1331 = vcmp.gt.f32.partialorder %v1302, 0.0
      %vm1332 = vcmp.gt.f32.partialorder %v1305, 0.0
      %vm1333 = vcmp.gt.f32.partialorder %v1308, 0.0
      %vm1334 = vcmp.gt.f32.partialorder %v1311, 0.0
      %vm1335 = vcmp.gt.f32.partialorder %v1314, 0.0
      %vm1336 = vcmp.gt.f32.partialorder %v1317, 0.0
      %vm1337 = vcmp.gt.f32.partialorder %v1320, 0.0
      %v1338 = vmul.f32 %v1275, 0.2
      %v1339 = vmul.f32 %v1278, 0.2
      %v1340 = vmul.f32 %v1281, 0.2
      %v1341 = vmul.f32 %v1284, 0.2
      %v1342 = vmul.f32 %v1287, 0.2
      %v1343 = vmul.f32 %v1290, 0.2
      %v1344 = vmul.f32 %v1293, 0.2
      %v1345 = vmul.f32 %v1296, 0.2
      %v1346 = vmul.f32 %v1299, 0.2
      %v1347 = vmul.f32 %v1302, 0.2
      %v1348 = vmul.f32 %v1305, 0.2
      %v1349 = vmul.f32 %v1308, 0.2
      %v1350 = vmul.f32 %v1311, 0.2
      %v1351 = vmul.f32 %v1314, 0.2
      %v1352 = vmul.f32 %v1317, 0.2
      %v1353 = vmul.f32 %v1320, 0.2
      %v1354 = vsel %vm1322, %v1275, %v1338
      %v1355 = vsel %vm1323, %v1278, %v1339
      %v1356 = vsel %vm1324, %v1281, %v1340
      %v1357 = vsel %vm1325, %v1284, %v1341
      %v1358 = vsel %vm1326, %v1287, %v1342
      %v1359 = vsel %vm1327, %v1290, %v1343
      %v1360 = vsel %vm1328, %v1293, %v1344
      %v1361 = vsel %vm1329, %v1296, %v1345
      %v1362 = vsel %vm1330, %v1299, %v1346
      %v1363 = vsel %vm1331, %v1302, %v1347
      %v1364 = vsel %vm1332, %v1305, %v1348
      %v1365 = vsel %vm1333, %v1308, %v1349
      %v1366 = vsel %vm1334, %v1311, %v1350
      %v1367 = vsel %vm1335, %v1314, %v1351
      %v1368 = vsel %vm1336, %v1317, %v1352
      %v1369 = vsel %vm1337, %v1320, %v1353
      %v1370 = vmul.f32 %v1354, %v1354
      %v1371 = vmul.f32 %v1355, %v1355
      %v1372 = vmul.f32 %v1356, %v1356
      %v1373 = vmul.f32 %v1357, %v1357
      %v1374 = vmul.f32 %v1358, %v1358
      %v1375 = vmul.f32 %v1359, %v1359
      %v1376 = vmul.f32 %v1360, %v1360
      %v1377 = vmul.f32 %v1361, %v1361
      %v1378 = vmul.f32 %v1362, %v1362
      %v1379 = vmul.f32 %v1363, %v1363
      %v1380 = vmul.f32 %v1364, %v1364
      %v1381 = vmul.f32 %v1365, %v1365
      %v1382 = vmul.f32 %v1366, %v1366
      %v1383 = vmul.f32 %v1367, %v1367
      %v1384 = vmul.f32 %v1368, %v1368
      %v1385 = vmul.f32 %v1369, %v1369
      %v1386 = vld [vmem:[%s5] sm:$0x1]
      %v1388 = vperm.slane %v1386, 0
      %v1390 = vmul.f32 %v1370, %v1388
      %v1391 = vmul.f32 %v1371, %v1388
      %v1392 = vmul.f32 %v1372, %v1388
      %v1393 = vmul.f32 %v1373, %v1388
      %v1394 = vmul.f32 %v1374, %v1388
      %v1395 = vmul.f32 %v1375, %v1388
      %v1396 = vmul.f32 %v1376, %v1388
      %v1397 = vmul.f32 %v1377, %v1388
      %v1398 = vmul.f32 %v1378, %v1388
      %v1399 = vmul.f32 %v1379, %v1388
      %v1400 = vmul.f32 %v1380, %v1388
      %v1401 = vmul.f32 %v1381, %v1388
      %v1402 = vmul.f32 %v1382, %v1388
      %v1403 = vmul.f32 %v1383, %v1388
      %v1404 = vmul.f32 %v1384, %v1388
      %v1405 = vmul.f32 %v1385, %v1388
      %vm1406 = vcmask 261120
      %v1407 = vsel %vm1406, %v1390, 0.0
      %1408 = vadd.xlane.f32.xlu0 %v1407
      %v1409 = vpop.xlane.xlu0 %1408
      %v1410 = vsel %vm1406, %v1391, 0.0
      %1411 = vadd.xlane.f32.xlu0 %v1410
      %v1412 = vpop.xlane.xlu0 %1411
      %v1413 = vsel %vm1406, %v1392, 0.0
      %1414 = vadd.xlane.f32.xlu0 %v1413
      %v1415 = vpop.xlane.xlu0 %1414
      %v1416 = vsel %vm1406, %v1393, 0.0
      %1417 = vadd.xlane.f32.xlu0 %v1416
      %v1418 = vpop.xlane.xlu0 %1417
      %v1419 = vsel %vm1406, %v1394, 0.0
      %1420 = vadd.xlane.f32.xlu0 %v1419
      %v1421 = vpop.xlane.xlu0 %1420
      %v1422 = vsel %vm1406, %v1395, 0.0
      %1423 = vadd.xlane.f32.xlu0 %v1422
      %v1424 = vpop.xlane.xlu0 %1423
      %v1425 = vsel %vm1406, %v1396, 0.0
      %1426 = vadd.xlane.f32.xlu0 %v1425
      %v1427 = vpop.xlane.xlu0 %1426
      %v1428 = vsel %vm1406, %v1397, 0.0
      %1429 = vadd.xlane.f32.xlu0 %v1428
      %v1430 = vpop.xlane.xlu0 %1429
      %v1431 = vsel %vm1406, %v1398, 0.0
      %1432 = vadd.xlane.f32.xlu0 %v1431
      %v1433 = vpop.xlane.xlu0 %1432
      %v1434 = vsel %vm1406, %v1399, 0.0
      %1435 = vadd.xlane.f32.xlu0 %v1434
      %v1436 = vpop.xlane.xlu0 %1435
      %v1437 = vsel %vm1406, %v1400, 0.0
      %1438 = vadd.xlane.f32.xlu0 %v1437
      %v1439 = vpop.xlane.xlu0 %1438
      %v1440 = vsel %vm1406, %v1401, 0.0
      %1441 = vadd.xlane.f32.xlu0 %v1440
      %v1442 = vpop.xlane.xlu0 %1441
      %v1443 = vsel %vm1406, %v1402, 0.0
      %1444 = vadd.xlane.f32.xlu0 %v1443
      %v1445 = vpop.xlane.xlu0 %1444
      %v1446 = vsel %vm1406, %v1403, 0.0
      %1447 = vadd.xlane.f32.xlu0 %v1446
      %v1448 = vpop.xlane.xlu0 %1447
      %v1449 = vsel %vm1406, %v1404, 0.0
      %1450 = vadd.xlane.f32.xlu0 %v1449
      %v1451 = vpop.xlane.xlu0 %1450
      %v1452 = vsel %vm1406, %v1405, 0.0
      %1453 = vadd.xlane.f32.xlu0 %v1452
      %v1454 = vpop.xlane.xlu0 %1453
      %v1455 = vld [vmem:[%s6] sm:$0x1]
      %v1457 = vperm.slane %v1455, 0
      %v1459 = vmul.f32 %v1091, %v1457
      %v1460 = vmul.f32 %v1092, %v1457
      %v1461 = vmul.f32 %v1093, %v1457
      %v1462 = vmul.f32 %v1094, %v1457
      %v1463 = vmul.f32 %v1095, %v1457
      %v1464 = vmul.f32 %v1096, %v1457
      %v1465 = vmul.f32 %v1097, %v1457
      %v1466 = vmul.f32 %v1098, %v1457
      %v1467 = vmul.f32 %v1099, %v1457
      %v1468 = vmul.f32 %v1100, %v1457
      %v1469 = vmul.f32 %v1101, %v1457
      %v1470 = vmul.f32 %v1102, %v1457
      %v1471 = vmul.f32 %v1103, %v1457
      %v1472 = vmul.f32 %v1104, %v1457
      %v1473 = vmul.f32 %v1105, %v1457
      %v1474 = vmul.f32 %v1106, %v1457
      %v1475 = vsel %vm562, %v1459, 0.0
      %1476 = vadd.xlane.f32.xlu0 %v1475
      %v1477 = vpop.xlane.xlu0 %1476
      %v1478 = vsel %vm562, %v1460, 0.0
      %1479 = vadd.xlane.f32.xlu0 %v1478
      %v1480 = vpop.xlane.xlu0 %1479
      %v1481 = vsel %vm562, %v1461, 0.0
      %1482 = vadd.xlane.f32.xlu0 %v1481
      %v1483 = vpop.xlane.xlu0 %1482
      %v1484 = vsel %vm562, %v1462, 0.0
      %1485 = vadd.xlane.f32.xlu0 %v1484
      %v1486 = vpop.xlane.xlu0 %1485
      %v1487 = vsel %vm562, %v1463, 0.0
      %1488 = vadd.xlane.f32.xlu0 %v1487
      %v1489 = vpop.xlane.xlu0 %1488
      %v1490 = vsel %vm562, %v1464, 0.0
      %1491 = vadd.xlane.f32.xlu0 %v1490
      %v1492 = vpop.xlane.xlu0 %1491
      %v1493 = vsel %vm562, %v1465, 0.0
      %1494 = vadd.xlane.f32.xlu0 %v1493
      %v1495 = vpop.xlane.xlu0 %1494
      %v1496 = vsel %vm562, %v1466, 0.0
      %1497 = vadd.xlane.f32.xlu0 %v1496
      %v1498 = vpop.xlane.xlu0 %1497
      %v1499 = vsel %vm562, %v1467, 0.0
      %1500 = vadd.xlane.f32.xlu0 %v1499
      %v1501 = vpop.xlane.xlu0 %1500
      %v1502 = vsel %vm562, %v1468, 0.0
      %1503 = vadd.xlane.f32.xlu0 %v1502
      %v1504 = vpop.xlane.xlu0 %1503
      %v1505 = vsel %vm562, %v1469, 0.0
      %1506 = vadd.xlane.f32.xlu0 %v1505
      %v1507 = vpop.xlane.xlu0 %1506
      %v1508 = vsel %vm562, %v1470, 0.0
      %1509 = vadd.xlane.f32.xlu0 %v1508
      %v1510 = vpop.xlane.xlu0 %1509
      %v1511 = vsel %vm562, %v1471, 0.0
      %1512 = vadd.xlane.f32.xlu0 %v1511
      %v1513 = vpop.xlane.xlu0 %1512
      %v1514 = vsel %vm562, %v1472, 0.0
      %1515 = vadd.xlane.f32.xlu0 %v1514
      %v1516 = vpop.xlane.xlu0 %1515
      %v1517 = vsel %vm562, %v1473, 0.0
      %1518 = vadd.xlane.f32.xlu0 %v1517
      %v1519 = vpop.xlane.xlu0 %1518
      %v1520 = vsel %vm562, %v1474, 0.0
      %1521 = vadd.xlane.f32.xlu0 %v1520
      %v1522 = vpop.xlane.xlu0 %1521
      %v1523 = vadd.f32 %v1409, %v1477
      %v1524 = vadd.f32 %v1412, %v1480
      %v1525 = vadd.f32 %v1415, %v1483
      %v1526 = vadd.f32 %v1418, %v1486
      %v1527 = vadd.f32 %v1421, %v1489
      %v1528 = vadd.f32 %v1424, %v1492
      %v1529 = vadd.f32 %v1427, %v1495
      %v1530 = vadd.f32 %v1430, %v1498
      %v1531 = vadd.f32 %v1433, %v1501
      %v1532 = vadd.f32 %v1436, %v1504
      %v1533 = vadd.f32 %v1439, %v1507
      %v1534 = vadd.f32 %v1442, %v1510
      %v1535 = vadd.f32 %v1445, %v1513
      %v1536 = vadd.f32 %v1448, %v1516
      %v1537 = vadd.f32 %v1451, %v1519
      %v1538 = vadd.f32 %v1454, %v1522
      %v1539 = vld [vmem:[#allocation2] sm:$0x1]
      %v1541 = vperm.slane %v1539, 0
      %v1543 = vadd.f32 %v1523, %v1541
      %v1544 = vadd.f32 %v1524, %v1541
      %v1545 = vadd.f32 %v1525, %v1541
      %v1546 = vadd.f32 %v1526, %v1541
      %v1547 = vadd.f32 %v1527, %v1541
      %v1548 = vadd.f32 %v1528, %v1541
      %v1549 = vadd.f32 %v1529, %v1541
      %v1550 = vadd.f32 %v1530, %v1541
      %v1551 = vadd.f32 %v1531, %v1541
      %v1552 = vadd.f32 %v1532, %v1541
      %v1553 = vadd.f32 %v1533, %v1541
      %v1554 = vadd.f32 %v1534, %v1541
      %v1555 = vadd.f32 %v1535, %v1541
      %v1556 = vadd.f32 %v1536, %v1541
      %v1557 = vadd.f32 %v1537, %v1541
      %v1558 = vadd.f32 %v1538, %v1541
      %v1559 = vmul.f32 %v1543, 0.0001
      %v1560 = vmul.f32 %v1544, 0.0001
      %v1561 = vmul.f32 %v1545, 0.0001
      %v1562 = vmul.f32 %v1546, 0.0001
      %v1563 = vmul.f32 %v1547, 0.0001
      %v1564 = vmul.f32 %v1548, 0.0001
      %v1565 = vmul.f32 %v1549, 0.0001
      %v1566 = vmul.f32 %v1550, 0.0001
      %v1567 = vmul.f32 %v1551, 0.0001
      %v1568 = vmul.f32 %v1552, 0.0001
      %v1569 = vmul.f32 %v1553, 0.0001
      %v1570 = vmul.f32 %v1554, 0.0001
      %v1571 = vmul.f32 %v1555, 0.0001
      %v1572 = vmul.f32 %v1556, 0.0001
      %v1573 = vmul.f32 %v1557, 0.0001
      %v1574 = vmul.f32 %v1558, 0.0001
      %1575 = vst.msk [vmem:[%s406] sm:$0xff] %vm1187, %v1559
      %1576 = vst.msk [vmem:[%s406 + $0x8] sm:$0xff] %vm1187, %v1560
      %1577 = vst.msk [vmem:[%s406 + $0x10] sm:$0xff] %vm1187, %v1561
      %1578 = vst.msk [vmem:[%s406 + $0x18] sm:$0xff] %vm1187, %v1562
      %1579 = vst.msk [vmem:[%s406 + $0x20] sm:$0xff] %vm1187, %v1563
      %1580 = vst.msk [vmem:[%s406 + $0x28] sm:$0xff] %vm1187, %v1564
      %1581 = vst.msk [vmem:[%s406 + $0x30] sm:$0xff] %vm1187, %v1565
      %1582 = vst.msk [vmem:[%s406 + $0x38] sm:$0xff] %vm1187, %v1566
      %1583 = vst.msk [vmem:[%s406 + $0x40] sm:$0xff] %vm1187, %v1567
      %1584 = vst.msk [vmem:[%s406 + $0x48] sm:$0xff] %vm1187, %v1568
      %1585 = vst.msk [vmem:[%s406 + $0x50] sm:$0xff] %vm1187, %v1569
      %1586 = vst.msk [vmem:[%s406 + $0x58] sm:$0xff] %vm1187, %v1570
      %1587 = vst.msk [vmem:[%s406 + $0x60] sm:$0xff] %vm1187, %v1571
      %1588 = vst.msk [vmem:[%s406 + $0x68] sm:$0xff] %vm1187, %v1572
      %1589 = vst.msk [vmem:[%s406 + $0x70] sm:$0xff] %vm1187, %v1573
      %1590 = vst.msk [vmem:[%s406 + $0x78] sm:$0xff] %vm1187, %v1574
      %s1591 = smul.u32 16, %s24
      %p1592 = scmp.lt.s32.totalorder %s1591, 47
      %s1593 = scalar_select %p1592, %s1591, 47
      %s1594 = smul.addr %s1593, 8
      %s1595 = scalar_lea.vmem %s8, %s1594
      %s1596 = smul.u32 16, %s24
      %p1597 = scmp.lt.s32.totalorder %s1596, 47
      %s1598 = scalar_select %p1597, %s1596, 47
      %s1599 = smul.addr %s1598, 8
      %s1600 = scalar_lea.vmem %s9, %s1599
      %s1601 = smul.u32 16, %s24
      %p1602 = scmp.lt.s32.totalorder %s1601, 47
      %s1603 = scalar_select %p1602, %s1601, 47
      %s1604 = smul.addr %s1603, 8
      %s1605 = scalar_lea.vmem %s10, %s1604
      // Predicated region
      $region53: #{tpu_custom_call.1} parent=51 // pred_check
        %p1606 = pneg %p220
      $region54: #{tpu_custom_call.1} parent=51 // pred_check_branch
        %1608 = sbr.rel (%p1606) target = $region56
      $region55: #{tpu_custom_call.1} parent=51 // pred_region
        %s1609 = smul.u32 16, %s24
      $region56: #{tpu_custom_call.1} parent=51 // pred_fallthru
        _
      // Predicated region
      $region57: #{tpu_custom_call.1} parent=51 // pred_check
        %p1610 = pneg %p246
      $region58: #{tpu_custom_call.1} parent=51 // pred_check_branch
        %1612 = sbr.rel (%p1610) target = $region60
      $region59: #{tpu_custom_call.1} parent=51 // pred_region
        %s1613 = smul.u32 16, %s24
      $region60: #{tpu_custom_call.1} parent=51 // pred_fallthru
        _
      // Predicated region
      $region61: #{tpu_custom_call.1} parent=51 // pred_check
        %p1614 = pneg %p272
      $region62: #{tpu_custom_call.1} parent=51 // pred_check_branch
        %1616 = sbr.rel (%p1614) target = $region64
      $region63: #{tpu_custom_call.1} parent=51 // pred_region
        %s1617 = smul.u32 16, %s24
      $region64: #{tpu_custom_call.1} parent=51 // pred_fallthru
        _
    $region52: #{tpu_custom_call.1} parent=5 // pred_fallthru
      _
    %p1618 = scmp.le.s32.totalorder 2, %s19
    // Predicated region
    $region65: #{tpu_custom_call.1} parent=5 // pred_check
      %p1619 = pneg %p1618
    $region66: #{tpu_custom_call.1} parent=5 // pred_check_branch
      %1621 = sbr.rel (%p1619) target = $region68
    $region67: #{tpu_custom_call.1} parent=5 // pred_region
      %s1622 = ssub.s32 %s19, 2
      // Predicated region
      $region69: #{tpu_custom_call.1} parent=67 // pred_check
        %p1623 = pneg %p226
      $region70: #{tpu_custom_call.1} parent=67 // pred_check_branch
        %1625 = sbr.rel (%p1623) target = $region72
      $region71: #{tpu_custom_call.1} parent=67 // pred_region
        %s1626 = smul.u32 16, %s25
        %p1627 = scmp.lt.s32.totalorder %s1626, 47
        %s1628 = scalar_select %p1627, %s1626, 47
        %s1629 = smul.addr %s1628, 8
        %s1630 = scalar_lea.vmem %s8, %s1629
      $region72: #{tpu_custom_call.1} parent=67 // pred_fallthru
        _
      // Predicated region
      $region73: #{tpu_custom_call.1} parent=67 // pred_check
        %p1631 = pneg %p252
      $region74: #{tpu_custom_call.1} parent=67 // pred_check_branch
        %1633 = sbr.rel (%p1631) target = $region76
      $region75: #{tpu_custom_call.1} parent=67 // pred_region
        %s1634 = smul.u32 16, %s25
        %p1635 = scmp.lt.s32.totalorder %s1634, 47
        %s1636 = scalar_select %p1635, %s1634, 47
        %s1637 = smul.addr %s1636, 8
        %s1638 = scalar_lea.vmem %s9, %s1637
      $region76: #{tpu_custom_call.1} parent=67 // pred_fallthru
        _
      // Predicated region
      $region77: #{tpu_custom_call.1} parent=67 // pred_check
        %p1639 = pneg %p278
      $region78: #{tpu_custom_call.1} parent=67 // pred_check_branch
        %1641 = sbr.rel (%p1639) target = $region80
      $region79: #{tpu_custom_call.1} parent=67 // pred_region
        %s1642 = smul.u32 16, %s25
        %p1643 = scmp.lt.s32.totalorder %s1642, 47
        %s1644 = scalar_select %p1643, %s1642, 47
        %s1645 = smul.addr %s1644, 8
        %s1646 = scalar_lea.vmem %s10, %s1645
      $region80: #{tpu_custom_call.1} parent=67 // pred_fallthru
        _
    $region68: #{tpu_custom_call.1} parent=5 // pred_fallthru
      _
  $region6: #{tpu_custom_call.1} parent=0 // loop_footer
    %s23 = sadd.s32 1, %s19
  $region7: #{tpu_custom_call.1} parent=0 // loop_footer_branch
    %18 = sbr.rel target = $region3
  $region8: #{tpu_custom_call.1} parent=0 // loop_exit
    _

</llo_original>
